<compile_context>
chip_gen: v7x
topology: tpu7x:2x2x1
jax: 0.10.0
libtpu: 0.0.40
codegen_flags: <defaults>
</compile_context>

<pallas_src>
import math
import jax
import jax.numpy as jnp
from jax import lax
from jax.experimental import pallas as pl
from jax.experimental.pallas import tpu as pltpu

# ---------------- config (small, consistent with the module) ----------------
B = 2          # batch
L = 8          # seq len (len_q == len_k == len_v)
D_MODEL = 32
N_HEAD = 4
D_K = 8
D_V = 8
EPS = 1e-6


def _mha_kernel(q_ref, k_ref, v_ref,
                wq_ref, wk_ref, wv_ref, wo_ref,
                gamma_ref, beta_ref,
                out_ref):
    """Single grid step: the whole (B*L, D_MODEL) problem lives in VMEM."""
    q2d = q_ref[...]          # (B*L, D_MODEL)
    k2d = k_ref[...]
    v2d = v_ref[...]

    wq = wq_ref[...]          # (D_MODEL, N_HEAD*D_K)
    wk = wk_ref[...]
    wv = wv_ref[...]          # (D_MODEL, N_HEAD*D_V)
    wo = wo_ref[...]          # (N_HEAD*D_V, D_MODEL)
    gamma = gamma_ref[...]    # (1, D_MODEL)
    beta = beta_ref[...]      # (1, D_MODEL)

    inv_temp = 1.0 / (D_K ** 0.5)

    # Fused Q/K/V projections: three full-lane-width matmuls over all B*L rows.
    qp = jnp.dot(q2d, wq, preferred_element_type=jnp.float32)   # (B*L, N_HEAD*D_K)
    kp = jnp.dot(k2d, wk, preferred_element_type=jnp.float32)   # (B*L, N_HEAD*D_K)
    vp = jnp.dot(v2d, wv, preferred_element_type=jnp.float32)   # (B*L, N_HEAD*D_V)

    # Contract the d_k axis of q and k directly (no explicit transpose).
    dims = (((1,), (1,)), ((), ()))

    # Static loop over batch elements (attention/softmax is per-batch).
    for b in range(B):
        r0 = b * L
        qb = qp[r0:r0 + L]                                       # (L, N_HEAD*D_K)
        kb = kp[r0:r0 + L]
        vb = vp[r0:r0 + L]

        proj = jnp.zeros((L, D_MODEL), jnp.float32)
        for h in range(N_HEAD):
            qh = qb[:, h * D_K:(h + 1) * D_K] * inv_temp          # (L, D_K)
            kh = kb[:, h * D_K:(h + 1) * D_K]                     # (L, D_K)
            vh = vb[:, h * D_V:(h + 1) * D_V]                     # (L, D_V)

            # TODO(synk): mask (masked_fill with -1e9) not implemented; mask=None path only.
            scores = lax.dot_general(qh, kh, dims,
                                     preferred_element_type=jnp.float32)  # (L, L)
            scores = scores - jnp.max(scores, axis=-1, keepdims=True)
            p = jnp.exp(scores)
            p = p * pl.reciprocal(jnp.sum(p, axis=-1, keepdims=True),
                                  approx=True)                    # softmax
            # attention dropout == identity in eval mode
            head_out = jnp.dot(p, vh, preferred_element_type=jnp.float32)  # (L, D_V)

            # Accumulate this head straight into the output projection
            # (replaces the lane-axis concatenate).
            proj = proj + jnp.dot(head_out, wo[h * D_V:(h + 1) * D_V, :],
                                  preferred_element_type=jnp.float32)      # (L, D_MODEL)

        # output dropout == identity in eval mode; residual=True
        x = proj + q2d[r0:r0 + L]

        # LayerNorm over last dim, eps=1e-6, elementwise affine
        mean = jnp.mean(x, axis=-1, keepdims=True)
        var = jnp.mean((x - mean) * (x - mean), axis=-1, keepdims=True)
        y = (x - mean) * lax.rsqrt(var + EPS) * gamma + beta

        out_ref[r0:r0 + L, :] = y.astype(out_ref.dtype)


def multi_head_attention(q, k, v, wq, wk, wv, wo, gamma, beta):
    """q,k,v: (B, L, D_MODEL). Returns (B, L, D_MODEL)."""
    b, l, d = q.shape
    q2d = q.reshape(b * l, d)
    k2d = k.reshape(b * l, d)
    v2d = v.reshape(b * l, d)
    gamma2d = gamma.reshape(1, d)
    beta2d = beta.reshape(1, d)

    full2d = lambda arr: pl.BlockSpec(arr.shape, lambda i: (0, 0))

    out2d = pl.pallas_call(
        _mha_kernel,
        out_shape=jax.ShapeDtypeStruct((b * l, d), q.dtype),
        grid_spec=pltpu.PrefetchScalarGridSpec(
            num_scalar_prefetch=0,
            grid=(1,),
            in_specs=[
                full2d(q2d), full2d(k2d), full2d(v2d),
                full2d(wq), full2d(wk), full2d(wv), full2d(wo),
                full2d(gamma2d), full2d(beta2d),
            ],
            out_specs=pl.BlockSpec((b * l, d), lambda i: (0, 0)),
        ),
        compiler_params=pltpu.CompilerParams(
            dimension_semantics=("arbitrary",)),
    )(q2d, k2d, v2d, wq, wk, wv, wo, gamma2d, beta2d)
    return out2d.reshape(b, l, d)


def reference_jax(q, k, v, wq, wk, wv, wo, gamma, beta):
    """Pure-JAX reference mirroring the PyTorch forward (eval mode)."""
    b, lq, d = q.shape
    qh = (q @ wq).reshape(b, lq, N_HEAD, D_K).transpose(0, 2, 1, 3)
    kh = (k @ wk).reshape(b, lq, N_HEAD, D_K).transpose(0, 2, 1, 3)
    vh = (v @ wv).reshape(b, lq, N_HEAD, D_V).transpose(0, 2, 1, 3)
    attn = jnp.einsum("bhqd,bhkd->bhqk", qh / (D_K ** 0.5), kh)
    attn = jax.nn.softmax(attn, axis=-1)
    o = jnp.einsum("bhqk,bhkd->bhqd", attn, vh)
    o = o.transpose(0, 2, 1, 3).reshape(b, lq, N_HEAD * D_V)
    o = o @ wo + q
    mean = jnp.mean(o, axis=-1, keepdims=True)
    var = jnp.mean((o - mean) ** 2, axis=-1, keepdims=True)
    return (o - mean) / jnp.sqrt(var + EPS) * gamma + beta


if __name__ == "__main__":
    key = jax.random.PRNGKey(0)
    ks = jax.random.split(key, 7)

    q = jax.random.normal(ks[0], (B, L, D_MODEL), jnp.float32)
    k = jax.random.normal(ks[1], (B, L, D_MODEL), jnp.float32)
    v = jax.random.normal(ks[2], (B, L, D_MODEL), jnp.float32)

    # Deterministic synthetic weights (Linear without bias), stored (in, out).
    lim = 1.0 / math.sqrt(D_MODEL)
    wq = jax.random.uniform(ks[3], (D_MODEL, N_HEAD * D_K), jnp.float32, -lim, lim)
    wk = jax.random.uniform(ks[4], (D_MODEL, N_HEAD * D_K), jnp.float32, -lim, lim)
    wv = jax.random.uniform(ks[5], (D_MODEL, N_HEAD * D_V), jnp.float32, -lim, lim)
    lim2 = 1.0 / math.sqrt(N_HEAD * D_V)
    wo = jax.random.uniform(ks[6], (N_HEAD * D_V, D_MODEL), jnp.float32, -lim2, lim2)
    gamma = jnp.ones((D_MODEL,), jnp.float32)
    beta = jnp.zeros((D_MODEL,), jnp.float32)

    out = multi_head_attention(q, k, v, wq, wk, wv, wo, gamma, beta)
    out = jax.block_until_ready(out)

    ref = reference_jax(q, k, v, wq, wk, wv, wo, gamma, beta)
    assert out.shape == (B, L, D_MODEL)
    # tolerance loosened slightly vs the exact-divide reference because the
    # softmax denominator uses the EUP approximate reciprocal.
    assert jnp.allclose(out, ref, atol=2e-3, rtol=2e-3), "mismatch vs reference"

    print("KERNEL_OK")
</pallas_src>

<mosaic_0001>
module attributes {stable_mosaic.version = 11 : i64} {
  func.func @_mha_kernel(%arg0: i32, %arg1: memref<16x32xf32, #tpu.memory_space<vmem>>, %arg2: memref<16x32xf32, #tpu.memory_space<vmem>>, %arg3: memref<16x32xf32, #tpu.memory_space<vmem>>, %arg4: memref<32x32xf32, #tpu.memory_space<vmem>>, %arg5: memref<32x32xf32, #tpu.memory_space<vmem>>, %arg6: memref<32x32xf32, #tpu.memory_space<vmem>>, %arg7: memref<32x32xf32, #tpu.memory_space<vmem>>, %arg8: memref<1x32xf32, #tpu.memory_space<vmem>>, %arg9: memref<1x32xf32, #tpu.memory_space<vmem>>, %arg10: memref<16x32xf32, #tpu.memory_space<vmem>>) attributes {dimension_semantics = [#tpu.dimension_semantics<arbitrary>], iteration_bounds = array<i64: 1>, scalar_prefetch = 0 : i64, scratch_operands = 0 : i64, tpu.core_type = #tpu.core_type<tc>, window_params = [{pipeline_mode = #tpu.pipeline_mode<synchronous>, transform_indices = @transform_0, window_bounds = array<i64: 16, 32>}, {pipeline_mode = #tpu.pipeline_mode<synchronous>, transform_indices = @transform_1, window_bounds = array<i64: 16, 32>}, {pipeline_mode = #tpu.pipeline_mode<synchronous>, transform_indices = @transform_2, window_bounds = array<i64: 16, 32>}, {pipeline_mode = #tpu.pipeline_mode<synchronous>, transform_indices = @transform_3, window_bounds = array<i64: 32, 32>}, {pipeline_mode = #tpu.pipeline_mode<synchronous>, transform_indices = @transform_4, window_bounds = array<i64: 32, 32>}, {pipeline_mode = #tpu.pipeline_mode<synchronous>, transform_indices = @transform_5, window_bounds = array<i64: 32, 32>}, {pipeline_mode = #tpu.pipeline_mode<synchronous>, transform_indices = @transform_6, window_bounds = array<i64: 32, 32>}, {pipeline_mode = #tpu.pipeline_mode<synchronous>, transform_indices = @transform_7, window_bounds = array<i64: 1, 32>}, {pipeline_mode = #tpu.pipeline_mode<synchronous>, transform_indices = @transform_8, window_bounds = array<i64: 1, 32>}, {pipeline_mode = #tpu.pipeline_mode<synchronous>, transform_indices = @transform_9, window_bounds = array<i64: 16, 32>}]} {
    %c0 = arith.constant 0 : index
    %c0_0 = arith.constant 0 : index
    %0 = vector.load %arg1[%c0, %c0_0] : memref<16x32xf32, #tpu.memory_space<vmem>>, vector<16x32xf32>
    %c0_1 = arith.constant 0 : index
    %c0_2 = arith.constant 0 : index
    %1 = vector.load %arg2[%c0_1, %c0_2] : memref<16x32xf32, #tpu.memory_space<vmem>>, vector<16x32xf32>
    %c0_3 = arith.constant 0 : index
    %c0_4 = arith.constant 0 : index
    %2 = vector.load %arg3[%c0_3, %c0_4] : memref<16x32xf32, #tpu.memory_space<vmem>>, vector<16x32xf32>
    %c0_5 = arith.constant 0 : index
    %c0_6 = arith.constant 0 : index
    %3 = vector.load %arg4[%c0_5, %c0_6] : memref<32x32xf32, #tpu.memory_space<vmem>>, vector<32x32xf32>
    %c0_7 = arith.constant 0 : index
    %c0_8 = arith.constant 0 : index
    %4 = vector.load %arg5[%c0_7, %c0_8] : memref<32x32xf32, #tpu.memory_space<vmem>>, vector<32x32xf32>
    %c0_9 = arith.constant 0 : index
    %c0_10 = arith.constant 0 : index
    %5 = vector.load %arg6[%c0_9, %c0_10] : memref<32x32xf32, #tpu.memory_space<vmem>>, vector<32x32xf32>
    %c0_11 = arith.constant 0 : index
    %c0_12 = arith.constant 0 : index
    %6 = vector.load %arg7[%c0_11, %c0_12] : memref<32x32xf32, #tpu.memory_space<vmem>>, vector<32x32xf32>
    %c0_13 = arith.constant 0 : index
    %c0_14 = arith.constant 0 : index
    %7 = vector.load %arg8[%c0_13, %c0_14] : memref<1x32xf32, #tpu.memory_space<vmem>>, vector<1x32xf32>
    %c0_15 = arith.constant 0 : index
    %c0_16 = arith.constant 0 : index
    %8 = vector.load %arg9[%c0_15, %c0_16] : memref<1x32xf32, #tpu.memory_space<vmem>>, vector<1x32xf32>
    %cst = arith.constant dense<0.000000e+00> : vector<16x32xf32>
    %9 = tpu.matmul %0, %3, %cst {dimension_numbers = #tpu.dot_dimension_numbers<[1], [0], [0], [1], [0, 0, 1, 1], [], []>} : vector<16x32xf32>, vector<32x32xf32>, vector<16x32xf32> -> vector<16x32xf32>
    %cst_17 = arith.constant dense<0.000000e+00> : vector<16x32xf32>
    %10 = tpu.matmul %1, %4, %cst_17 {dimension_numbers = #tpu.dot_dimension_numbers<[1], [0], [0], [1], [0, 0, 1, 1], [], []>} : vector<16x32xf32>, vector<32x32xf32>, vector<16x32xf32> -> vector<16x32xf32>
    %cst_18 = arith.constant dense<0.000000e+00> : vector<16x32xf32>
    %11 = tpu.matmul %2, %5, %cst_18 {dimension_numbers = #tpu.dot_dimension_numbers<[1], [0], [0], [1], [0, 0, 1, 1], [], []>} : vector<16x32xf32>, vector<32x32xf32>, vector<16x32xf32> -> vector<16x32xf32>
    %12 = vector.extract_strided_slice %9 {offsets = [0, 0], sizes = [8, 32], strides = [1, 1]} : vector<16x32xf32> to vector<8x32xf32>
    %13 = vector.extract_strided_slice %10 {offsets = [0, 0], sizes = [8, 32], strides = [1, 1]} : vector<16x32xf32> to vector<8x32xf32>
    %14 = vector.extract_strided_slice %11 {offsets = [0, 0], sizes = [8, 32], strides = [1, 1]} : vector<16x32xf32> to vector<8x32xf32>
    %cst_19 = arith.constant 0.000000e+00 : f32
    %15 = vector.broadcast %cst_19 : f32 to vector<8x32xf32>
    %16 = vector.extract_strided_slice %12 {offsets = [0, 0], sizes = [8, 8], strides = [1, 1]} : vector<8x32xf32> to vector<8x8xf32>
    %cst_20 = arith.constant 0.353553385 : f32
    %17 = vector.broadcast %cst_20 : f32 to vector<8x8xf32>
    %18 = arith.mulf %16, %17 : vector<8x8xf32>
    %19 = vector.extract_strided_slice %13 {offsets = [0, 0], sizes = [8, 8], strides = [1, 1]} : vector<8x32xf32> to vector<8x8xf32>
    %20 = vector.extract_strided_slice %14 {offsets = [0, 0], sizes = [8, 8], strides = [1, 1]} : vector<8x32xf32> to vector<8x8xf32>
    %cst_21 = arith.constant dense<0.000000e+00> : vector<8x8xf32>
    %21 = tpu.matmul %18, %19, %cst_21 {dimension_numbers = #tpu.dot_dimension_numbers<[1], [1], [0], [0], [0, 0, 1, 0], [], []>} : vector<8x8xf32>, vector<8x8xf32>, vector<8x8xf32> -> vector<8x8xf32>
    %cst_22 = arith.constant dense<0xFF800000> : vector<8xf32>
    %22 = vector.multi_reduction <maximumf>, %21, %cst_22 [1] : vector<8x8xf32> to vector<8xf32>
    %23 = vector.shape_cast %22 : vector<8xf32> to vector<8x1xf32>
    %24 = vector.broadcast %23 : vector<8x1xf32> to vector<8x8xf32>
    %25 = arith.subf %21, %24 : vector<8x8xf32>
    %26 = math.exp %25 : vector<8x8xf32>
    %cst_23 = arith.constant dense<0.000000e+00> : vector<8xf32>
    %27 = vector.multi_reduction <add>, %26, %cst_23 [1] : vector<8x8xf32> to vector<8xf32>
    %28 = vector.shape_cast %27 : vector<8xf32> to vector<8x1xf32>
    %29 = tpu.reciprocal %28 {approx = true} : vector<8x1xf32> -> vector<8x1xf32>
    %30 = vector.broadcast %29 : vector<8x1xf32> to vector<8x8xf32>
    %31 = arith.mulf %26, %30 : vector<8x8xf32>
    %cst_24 = arith.constant dense<0.000000e+00> : vector<8x8xf32>
    %32 = tpu.matmul %31, %20, %cst_24 {dimension_numbers = #tpu.dot_dimension_numbers<[1], [0], [0], [1], [0, 0, 1, 1], [], []>} : vector<8x8xf32>, vector<8x8xf32>, vector<8x8xf32> -> vector<8x8xf32>
    %33 = vector.extract_strided_slice %6 {offsets = [0, 0], sizes = [8, 32], strides = [1, 1]} : vector<32x32xf32> to vector<8x32xf32>
    %cst_25 = arith.constant dense<0.000000e+00> : vector<8x32xf32>
    %34 = tpu.matmul %32, %33, %cst_25 {dimension_numbers = #tpu.dot_dimension_numbers<[1], [0], [0], [1], [0, 0, 1, 1], [], []>} : vector<8x8xf32>, vector<8x32xf32>, vector<8x32xf32> -> vector<8x32xf32>
    %35 = arith.addf %15, %34 : vector<8x32xf32>
    %36 = vector.extract_strided_slice %12 {offsets = [0, 8], sizes = [8, 8], strides = [1, 1]} : vector<8x32xf32> to vector<8x8xf32>
    %cst_26 = arith.constant 0.353553385 : f32
    %37 = vector.broadcast %cst_26 : f32 to vector<8x8xf32>
    %38 = arith.mulf %36, %37 : vector<8x8xf32>
    %39 = vector.extract_strided_slice %13 {offsets = [0, 8], sizes = [8, 8], strides = [1, 1]} : vector<8x32xf32> to vector<8x8xf32>
    %40 = vector.extract_strided_slice %14 {offsets = [0, 8], sizes = [8, 8], strides = [1, 1]} : vector<8x32xf32> to vector<8x8xf32>
    %cst_27 = arith.constant dense<0.000000e+00> : vector<8x8xf32>
    %41 = tpu.matmul %38, %39, %cst_27 {dimension_numbers = #tpu.dot_dimension_numbers<[1], [1], [0], [0], [0, 0, 1, 0], [], []>} : vector<8x8xf32>, vector<8x8xf32>, vector<8x8xf32> -> vector<8x8xf32>
    %cst_28 = arith.constant dense<0xFF800000> : vector<8xf32>
    %42 = vector.multi_reduction <maximumf>, %41, %cst_28 [1] : vector<8x8xf32> to vector<8xf32>
    %43 = vector.shape_cast %42 : vector<8xf32> to vector<8x1xf32>
    %44 = vector.broadcast %43 : vector<8x1xf32> to vector<8x8xf32>
    %45 = arith.subf %41, %44 : vector<8x8xf32>
    %46 = math.exp %45 : vector<8x8xf32>
    %cst_29 = arith.constant dense<0.000000e+00> : vector<8xf32>
    %47 = vector.multi_reduction <add>, %46, %cst_29 [1] : vector<8x8xf32> to vector<8xf32>
    %48 = vector.shape_cast %47 : vector<8xf32> to vector<8x1xf32>
    %49 = tpu.reciprocal %48 {approx = true} : vector<8x1xf32> -> vector<8x1xf32>
    %50 = vector.broadcast %49 : vector<8x1xf32> to vector<8x8xf32>
    %51 = arith.mulf %46, %50 : vector<8x8xf32>
    %cst_30 = arith.constant dense<0.000000e+00> : vector<8x8xf32>
    %52 = tpu.matmul %51, %40, %cst_30 {dimension_numbers = #tpu.dot_dimension_numbers<[1], [0], [0], [1], [0, 0, 1, 1], [], []>} : vector<8x8xf32>, vector<8x8xf32>, vector<8x8xf32> -> vector<8x8xf32>
    %53 = vector.extract_strided_slice %6 {offsets = [8, 0], sizes = [8, 32], strides = [1, 1]} : vector<32x32xf32> to vector<8x32xf32>
    %cst_31 = arith.constant dense<0.000000e+00> : vector<8x32xf32>
    %54 = tpu.matmul %52, %53, %cst_31 {dimension_numbers = #tpu.dot_dimension_numbers<[1], [0], [0], [1], [0, 0, 1, 1], [], []>} : vector<8x8xf32>, vector<8x32xf32>, vector<8x32xf32> -> vector<8x32xf32>
    %55 = arith.addf %35, %54 : vector<8x32xf32>
    %56 = vector.extract_strided_slice %12 {offsets = [0, 16], sizes = [8, 8], strides = [1, 1]} : vector<8x32xf32> to vector<8x8xf32>
    %cst_32 = arith.constant 0.353553385 : f32
    %57 = vector.broadcast %cst_32 : f32 to vector<8x8xf32>
    %58 = arith.mulf %56, %57 : vector<8x8xf32>
    %59 = vector.extract_strided_slice %13 {offsets = [0, 16], sizes = [8, 8], strides = [1, 1]} : vector<8x32xf32> to vector<8x8xf32>
    %60 = vector.extract_strided_slice %14 {offsets = [0, 16], sizes = [8, 8], strides = [1, 1]} : vector<8x32xf32> to vector<8x8xf32>
    %cst_33 = arith.constant dense<0.000000e+00> : vector<8x8xf32>
    %61 = tpu.matmul %58, %59, %cst_33 {dimension_numbers = #tpu.dot_dimension_numbers<[1], [1], [0], [0], [0, 0, 1, 0], [], []>} : vector<8x8xf32>, vector<8x8xf32>, vector<8x8xf32> -> vector<8x8xf32>
    %cst_34 = arith.constant dense<0xFF800000> : vector<8xf32>
    %62 = vector.multi_reduction <maximumf>, %61, %cst_34 [1] : vector<8x8xf32> to vector<8xf32>
    %63 = vector.shape_cast %62 : vector<8xf32> to vector<8x1xf32>
    %64 = vector.broadcast %63 : vector<8x1xf32> to vector<8x8xf32>
    %65 = arith.subf %61, %64 : vector<8x8xf32>
    %66 = math.exp %65 : vector<8x8xf32>
    %cst_35 = arith.constant dense<0.000000e+00> : vector<8xf32>
    %67 = vector.multi_reduction <add>, %66, %cst_35 [1] : vector<8x8xf32> to vector<8xf32>
    %68 = vector.shape_cast %67 : vector<8xf32> to vector<8x1xf32>
    %69 = tpu.reciprocal %68 {approx = true} : vector<8x1xf32> -> vector<8x1xf32>
    %70 = vector.broadcast %69 : vector<8x1xf32> to vector<8x8xf32>
    %71 = arith.mulf %66, %70 : vector<8x8xf32>
    %cst_36 = arith.constant dense<0.000000e+00> : vector<8x8xf32>
    %72 = tpu.matmul %71, %60, %cst_36 {dimension_numbers = #tpu.dot_dimension_numbers<[1], [0], [0], [1], [0, 0, 1, 1], [], []>} : vector<8x8xf32>, vector<8x8xf32>, vector<8x8xf32> -> vector<8x8xf32>
    %73 = vector.extract_strided_slice %6 {offsets = [16, 0], sizes = [8, 32], strides = [1, 1]} : vector<32x32xf32> to vector<8x32xf32>
    %cst_37 = arith.constant dense<0.000000e+00> : vector<8x32xf32>
    %74 = tpu.matmul %72, %73, %cst_37 {dimension_numbers = #tpu.dot_dimension_numbers<[1], [0], [0], [1], [0, 0, 1, 1], [], []>} : vector<8x8xf32>, vector<8x32xf32>, vector<8x32xf32> -> vector<8x32xf32>
    %75 = arith.addf %55, %74 : vector<8x32xf32>
    %76 = vector.extract_strided_slice %12 {offsets = [0, 24], sizes = [8, 8], strides = [1, 1]} : vector<8x32xf32> to vector<8x8xf32>
    %cst_38 = arith.constant 0.353553385 : f32
    %77 = vector.broadcast %cst_38 : f32 to vector<8x8xf32>
    %78 = arith.mulf %76, %77 : vector<8x8xf32>
    %79 = vector.extract_strided_slice %13 {offsets = [0, 24], sizes = [8, 8], strides = [1, 1]} : vector<8x32xf32> to vector<8x8xf32>
    %80 = vector.extract_strided_slice %14 {offsets = [0, 24], sizes = [8, 8], strides = [1, 1]} : vector<8x32xf32> to vector<8x8xf32>
    %cst_39 = arith.constant dense<0.000000e+00> : vector<8x8xf32>
    %81 = tpu.matmul %78, %79, %cst_39 {dimension_numbers = #tpu.dot_dimension_numbers<[1], [1], [0], [0], [0, 0, 1, 0], [], []>} : vector<8x8xf32>, vector<8x8xf32>, vector<8x8xf32> -> vector<8x8xf32>
    %cst_40 = arith.constant dense<0xFF800000> : vector<8xf32>
    %82 = vector.multi_reduction <maximumf>, %81, %cst_40 [1] : vector<8x8xf32> to vector<8xf32>
    %83 = vector.shape_cast %82 : vector<8xf32> to vector<8x1xf32>
    %84 = vector.broadcast %83 : vector<8x1xf32> to vector<8x8xf32>
    %85 = arith.subf %81, %84 : vector<8x8xf32>
    %86 = math.exp %85 : vector<8x8xf32>
    %cst_41 = arith.constant dense<0.000000e+00> : vector<8xf32>
    %87 = vector.multi_reduction <add>, %86, %cst_41 [1] : vector<8x8xf32> to vector<8xf32>
    %88 = vector.shape_cast %87 : vector<8xf32> to vector<8x1xf32>
    %89 = tpu.reciprocal %88 {approx = true} : vector<8x1xf32> -> vector<8x1xf32>
    %90 = vector.broadcast %89 : vector<8x1xf32> to vector<8x8xf32>
    %91 = arith.mulf %86, %90 : vector<8x8xf32>
    %cst_42 = arith.constant dense<0.000000e+00> : vector<8x8xf32>
    %92 = tpu.matmul %91, %80, %cst_42 {dimension_numbers = #tpu.dot_dimension_numbers<[1], [0], [0], [1], [0, 0, 1, 1], [], []>} : vector<8x8xf32>, vector<8x8xf32>, vector<8x8xf32> -> vector<8x8xf32>
    %93 = vector.extract_strided_slice %6 {offsets = [24, 0], sizes = [8, 32], strides = [1, 1]} : vector<32x32xf32> to vector<8x32xf32>
    %cst_43 = arith.constant dense<0.000000e+00> : vector<8x32xf32>
    %94 = tpu.matmul %92, %93, %cst_43 {dimension_numbers = #tpu.dot_dimension_numbers<[1], [0], [0], [1], [0, 0, 1, 1], [], []>} : vector<8x8xf32>, vector<8x32xf32>, vector<8x32xf32> -> vector<8x32xf32>
    %95 = arith.addf %75, %94 : vector<8x32xf32>
    %96 = vector.extract_strided_slice %0 {offsets = [0, 0], sizes = [8, 32], strides = [1, 1]} : vector<16x32xf32> to vector<8x32xf32>
    %97 = arith.addf %95, %96 : vector<8x32xf32>
    %cst_44 = arith.constant dense<0.000000e+00> : vector<8xf32>
    %98 = vector.multi_reduction <add>, %97, %cst_44 [1] : vector<8x32xf32> to vector<8xf32>
    %99 = vector.shape_cast %98 : vector<8xf32> to vector<8x1xf32>
    %cst_45 = arith.constant 3.200000e+01 : f32
    %100 = vector.broadcast %cst_45 : f32 to vector<8x1xf32>
    %101 = arith.divf %99, %100 : vector<8x1xf32>
    %102 = vector.broadcast %101 : vector<8x1xf32> to vector<8x32xf32>
    %103 = arith.subf %97, %102 : vector<8x32xf32>
    %104 = vector.broadcast %101 : vector<8x1xf32> to vector<8x32xf32>
    %105 = arith.subf %97, %104 : vector<8x32xf32>
    %106 = arith.mulf %103, %105 : vector<8x32xf32>
    %cst_46 = arith.constant dense<0.000000e+00> : vector<8xf32>
    %107 = vector.multi_reduction <add>, %106, %cst_46 [1] : vector<8x32xf32> to vector<8xf32>
    %108 = vector.shape_cast %107 : vector<8xf32> to vector<8x1xf32>
    %cst_47 = arith.constant 3.200000e+01 : f32
    %109 = vector.broadcast %cst_47 : f32 to vector<8x1xf32>
    %110 = arith.divf %108, %109 : vector<8x1xf32>
    %111 = vector.broadcast %101 : vector<8x1xf32> to vector<8x32xf32>
    %112 = arith.subf %97, %111 : vector<8x32xf32>
    %cst_48 = arith.constant 9.99999997E-7 : f32
    %113 = vector.broadcast %cst_48 : f32 to vector<8x1xf32>
    %114 = arith.addf %110, %113 : vector<8x1xf32>
    %115 = math.rsqrt %114 : vector<8x1xf32>
    %116 = vector.broadcast %115 : vector<8x1xf32> to vector<8x32xf32>
    %117 = arith.mulf %112, %116 : vector<8x32xf32>
    %118 = vector.broadcast %7 : vector<1x32xf32> to vector<8x32xf32>
    %119 = arith.mulf %117, %118 : vector<8x32xf32>
    %120 = vector.broadcast %8 : vector<1x32xf32> to vector<8x32xf32>
    %121 = arith.addf %119, %120 : vector<8x32xf32>
    %c0_49 = arith.constant 0 : index
    %c0_50 = arith.constant 0 : index
    %122 = vector.load %arg10[%c0_49, %c0_50] : memref<16x32xf32, #tpu.memory_space<vmem>>, vector<8x32xf32>
    tpu.vector_store %arg10[%c0_49, %c0_50], %121 {strides = array<i32>} : memref<16x32xf32, #tpu.memory_space<vmem>>, vector<8x32xf32>,
    %123 = vector.extract_strided_slice %9 {offsets = [8, 0], sizes = [8, 32], strides = [1, 1]} : vector<16x32xf32> to vector<8x32xf32>
    %124 = vector.extract_strided_slice %10 {offsets = [8, 0], sizes = [8, 32], strides = [1, 1]} : vector<16x32xf32> to vector<8x32xf32>
    %125 = vector.extract_strided_slice %11 {offsets = [8, 0], sizes = [8, 32], strides = [1, 1]} : vector<16x32xf32> to vector<8x32xf32>
    %cst_51 = arith.constant 0.000000e+00 : f32
    %126 = vector.broadcast %cst_51 : f32 to vector<8x32xf32>
    %127 = vector.extract_strided_slice %123 {offsets = [0, 0], sizes = [8, 8], strides = [1, 1]} : vector<8x32xf32> to vector<8x8xf32>
    %cst_52 = arith.constant 0.353553385 : f32
    %128 = vector.broadcast %cst_52 : f32 to vector<8x8xf32>
    %129 = arith.mulf %127, %128 : vector<8x8xf32>
    %130 = vector.extract_strided_slice %124 {offsets = [0, 0], sizes = [8, 8], strides = [1, 1]} : vector<8x32xf32> to vector<8x8xf32>
    %131 = vector.extract_strided_slice %125 {offsets = [0, 0], sizes = [8, 8], strides = [1, 1]} : vector<8x32xf32> to vector<8x8xf32>
    %cst_53 = arith.constant dense<0.000000e+00> : vector<8x8xf32>
    %132 = tpu.matmul %129, %130, %cst_53 {dimension_numbers = #tpu.dot_dimension_numbers<[1], [1], [0], [0], [0, 0, 1, 0], [], []>} : vector<8x8xf32>, vector<8x8xf32>, vector<8x8xf32> -> vector<8x8xf32>
    %cst_54 = arith.constant dense<0xFF800000> : vector<8xf32>
    %133 = vector.multi_reduction <maximumf>, %132, %cst_54 [1] : vector<8x8xf32> to vector<8xf32>
    %134 = vector.shape_cast %133 : vector<8xf32> to vector<8x1xf32>
    %135 = vector.broadcast %134 : vector<8x1xf32> to vector<8x8xf32>
    %136 = arith.subf %132, %135 : vector<8x8xf32>
    %137 = math.exp %136 : vector<8x8xf32>
    %cst_55 = arith.constant dense<0.000000e+00> : vector<8xf32>
    %138 = vector.multi_reduction <add>, %137, %cst_55 [1] : vector<8x8xf32> to vector<8xf32>
    %139 = vector.shape_cast %138 : vector<8xf32> to vector<8x1xf32>
    %140 = tpu.reciprocal %139 {approx = true} : vector<8x1xf32> -> vector<8x1xf32>
    %141 = vector.broadcast %140 : vector<8x1xf32> to vector<8x8xf32>
    %142 = arith.mulf %137, %141 : vector<8x8xf32>
    %cst_56 = arith.constant dense<0.000000e+00> : vector<8x8xf32>
    %143 = tpu.matmul %142, %131, %cst_56 {dimension_numbers = #tpu.dot_dimension_numbers<[1], [0], [0], [1], [0, 0, 1, 1], [], []>} : vector<8x8xf32>, vector<8x8xf32>, vector<8x8xf32> -> vector<8x8xf32>
    %144 = vector.extract_strided_slice %6 {offsets = [0, 0], sizes = [8, 32], strides = [1, 1]} : vector<32x32xf32> to vector<8x32xf32>
    %cst_57 = arith.constant dense<0.000000e+00> : vector<8x32xf32>
    %145 = tpu.matmul %143, %144, %cst_57 {dimension_numbers = #tpu.dot_dimension_numbers<[1], [0], [0], [1], [0, 0, 1, 1], [], []>} : vector<8x8xf32>, vector<8x32xf32>, vector<8x32xf32> -> vector<8x32xf32>
    %146 = arith.addf %126, %145 : vector<8x32xf32>
    %147 = vector.extract_strided_slice %123 {offsets = [0, 8], sizes = [8, 8], strides = [1, 1]} : vector<8x32xf32> to vector<8x8xf32>
    %cst_58 = arith.constant 0.353553385 : f32
    %148 = vector.broadcast %cst_58 : f32 to vector<8x8xf32>
    %149 = arith.mulf %147, %148 : vector<8x8xf32>
    %150 = vector.extract_strided_slice %124 {offsets = [0, 8], sizes = [8, 8], strides = [1, 1]} : vector<8x32xf32> to vector<8x8xf32>
    %151 = vector.extract_strided_slice %125 {offsets = [0, 8], sizes = [8, 8], strides = [1, 1]} : vector<8x32xf32> to vector<8x8xf32>
    %cst_59 = arith.constant dense<0.000000e+00> : vector<8x8xf32>
    %152 = tpu.matmul %149, %150, %cst_59 {dimension_numbers = #tpu.dot_dimension_numbers<[1], [1], [0], [0], [0, 0, 1, 0], [], []>} : vector<8x8xf32>, vector<8x8xf32>, vector<8x8xf32> -> vector<8x8xf32>
    %cst_60 = arith.constant dense<0xFF800000> : vector<8xf32>
    %153 = vector.multi_reduction <maximumf>, %152, %cst_60 [1] : vector<8x8xf32> to vector<8xf32>
    %154 = vector.shape_cast %153 : vector<8xf32> to vector<8x1xf32>
    %155 = vector.broadcast %154 : vector<8x1xf32> to vector<8x8xf32>
    %156 = arith.subf %152, %155 : vector<8x8xf32>
    %157 = math.exp %156 : vector<8x8xf32>
    %cst_61 = arith.constant dense<0.000000e+00> : vector<8xf32>
    %158 = vector.multi_reduction <add>, %157, %cst_61 [1] : vector<8x8xf32> to vector<8xf32>
    %159 = vector.shape_cast %158 : vector<8xf32> to vector<8x1xf32>
    %160 = tpu.reciprocal %159 {approx = true} : vector<8x1xf32> -> vector<8x1xf32>
    %161 = vector.broadcast %160 : vector<8x1xf32> to vector<8x8xf32>
    %162 = arith.mulf %157, %161 : vector<8x8xf32>
    %cst_62 = arith.constant dense<0.000000e+00> : vector<8x8xf32>
    %163 = tpu.matmul %162, %151, %cst_62 {dimension_numbers = #tpu.dot_dimension_numbers<[1], [0], [0], [1], [0, 0, 1, 1], [], []>} : vector<8x8xf32>, vector<8x8xf32>, vector<8x8xf32> -> vector<8x8xf32>
    %164 = vector.extract_strided_slice %6 {offsets = [8, 0], sizes = [8, 32], strides = [1, 1]} : vector<32x32xf32> to vector<8x32xf32>
    %cst_63 = arith.constant dense<0.000000e+00> : vector<8x32xf32>
    %165 = tpu.matmul %163, %164, %cst_63 {dimension_numbers = #tpu.dot_dimension_numbers<[1], [0], [0], [1], [0, 0, 1, 1], [], []>} : vector<8x8xf32>, vector<8x32xf32>, vector<8x32xf32> -> vector<8x32xf32>
    %166 = arith.addf %146, %165 : vector<8x32xf32>
    %167 = vector.extract_strided_slice %123 {offsets = [0, 16], sizes = [8, 8], strides = [1, 1]} : vector<8x32xf32> to vector<8x8xf32>
    %cst_64 = arith.constant 0.353553385 : f32
    %168 = vector.broadcast %cst_64 : f32 to vector<8x8xf32>
    %169 = arith.mulf %167, %168 : vector<8x8xf32>
    %170 = vector.extract_strided_slice %124 {offsets = [0, 16], sizes = [8, 8], strides = [1, 1]} : vector<8x32xf32> to vector<8x8xf32>
    %171 = vector.extract_strided_slice %125 {offsets = [0, 16], sizes = [8, 8], strides = [1, 1]} : vector<8x32xf32> to vector<8x8xf32>
    %cst_65 = arith.constant dense<0.000000e+00> : vector<8x8xf32>
    %172 = tpu.matmul %169, %170, %cst_65 {dimension_numbers = #tpu.dot_dimension_numbers<[1], [1], [0], [0], [0, 0, 1, 0], [], []>} : vector<8x8xf32>, vector<8x8xf32>, vector<8x8xf32> -> vector<8x8xf32>
    %cst_66 = arith.constant dense<0xFF800000> : vector<8xf32>
    %173 = vector.multi_reduction <maximumf>, %172, %cst_66 [1] : vector<8x8xf32> to vector<8xf32>
    %174 = vector.shape_cast %173 : vector<8xf32> to vector<8x1xf32>
    %175 = vector.broadcast %174 : vector<8x1xf32> to vector<8x8xf32>
    %176 = arith.subf %172, %175 : vector<8x8xf32>
    %177 = math.exp %176 : vector<8x8xf32>
    %cst_67 = arith.constant dense<0.000000e+00> : vector<8xf32>
    %178 = vector.multi_reduction <add>, %177, %cst_67 [1] : vector<8x8xf32> to vector<8xf32>
    %179 = vector.shape_cast %178 : vector<8xf32> to vector<8x1xf32>
    %180 = tpu.reciprocal %179 {approx = true} : vector<8x1xf32> -> vector<8x1xf32>
    %181 = vector.broadcast %180 : vector<8x1xf32> to vector<8x8xf32>
    %182 = arith.mulf %177, %181 : vector<8x8xf32>
    %cst_68 = arith.constant dense<0.000000e+00> : vector<8x8xf32>
    %183 = tpu.matmul %182, %171, %cst_68 {dimension_numbers = #tpu.dot_dimension_numbers<[1], [0], [0], [1], [0, 0, 1, 1], [], []>} : vector<8x8xf32>, vector<8x8xf32>, vector<8x8xf32> -> vector<8x8xf32>
    %184 = vector.extract_strided_slice %6 {offsets = [16, 0], sizes = [8, 32], strides = [1, 1]} : vector<32x32xf32> to vector<8x32xf32>
    %cst_69 = arith.constant dense<0.000000e+00> : vector<8x32xf32>
    %185 = tpu.matmul %183, %184, %cst_69 {dimension_numbers = #tpu.dot_dimension_numbers<[1], [0], [0], [1], [0, 0, 1, 1], [], []>} : vector<8x8xf32>, vector<8x32xf32>, vector<8x32xf32> -> vector<8x32xf32>
    %186 = arith.addf %166, %185 : vector<8x32xf32>
    %187 = vector.extract_strided_slice %123 {offsets = [0, 24], sizes = [8, 8], strides = [1, 1]} : vector<8x32xf32> to vector<8x8xf32>
    %cst_70 = arith.constant 0.353553385 : f32
    %188 = vector.broadcast %cst_70 : f32 to vector<8x8xf32>
    %189 = arith.mulf %187, %188 : vector<8x8xf32>
    %190 = vector.extract_strided_slice %124 {offsets = [0, 24], sizes = [8, 8], strides = [1, 1]} : vector<8x32xf32> to vector<8x8xf32>
    %191 = vector.extract_strided_slice %125 {offsets = [0, 24], sizes = [8, 8], strides = [1, 1]} : vector<8x32xf32> to vector<8x8xf32>
    %cst_71 = arith.constant dense<0.000000e+00> : vector<8x8xf32>
    %192 = tpu.matmul %189, %190, %cst_71 {dimension_numbers = #tpu.dot_dimension_numbers<[1], [1], [0], [0], [0, 0, 1, 0], [], []>} : vector<8x8xf32>, vector<8x8xf32>, vector<8x8xf32> -> vector<8x8xf32>
    %cst_72 = arith.constant dense<0xFF800000> : vector<8xf32>
    %193 = vector.multi_reduction <maximumf>, %192, %cst_72 [1] : vector<8x8xf32> to vector<8xf32>
    %194 = vector.shape_cast %193 : vector<8xf32> to vector<8x1xf32>
    %195 = vector.broadcast %194 : vector<8x1xf32> to vector<8x8xf32>
    %196 = arith.subf %192, %195 : vector<8x8xf32>
    %197 = math.exp %196 : vector<8x8xf32>
    %cst_73 = arith.constant dense<0.000000e+00> : vector<8xf32>
    %198 = vector.multi_reduction <add>, %197, %cst_73 [1] : vector<8x8xf32> to vector<8xf32>
    %199 = vector.shape_cast %198 : vector<8xf32> to vector<8x1xf32>
    %200 = tpu.reciprocal %199 {approx = true} : vector<8x1xf32> -> vector<8x1xf32>
    %201 = vector.broadcast %200 : vector<8x1xf32> to vector<8x8xf32>
    %202 = arith.mulf %197, %201 : vector<8x8xf32>
    %cst_74 = arith.constant dense<0.000000e+00> : vector<8x8xf32>
    %203 = tpu.matmul %202, %191, %cst_74 {dimension_numbers = #tpu.dot_dimension_numbers<[1], [0], [0], [1], [0, 0, 1, 1], [], []>} : vector<8x8xf32>, vector<8x8xf32>, vector<8x8xf32> -> vector<8x8xf32>
    %204 = vector.extract_strided_slice %6 {offsets = [24, 0], sizes = [8, 32], strides = [1, 1]} : vector<32x32xf32> to vector<8x32xf32>
    %cst_75 = arith.constant dense<0.000000e+00> : vector<8x32xf32>
    %205 = tpu.matmul %203, %204, %cst_75 {dimension_numbers = #tpu.dot_dimension_numbers<[1], [0], [0], [1], [0, 0, 1, 1], [], []>} : vector<8x8xf32>, vector<8x32xf32>, vector<8x32xf32> -> vector<8x32xf32>
    %206 = arith.addf %186, %205 : vector<8x32xf32>
    %207 = vector.extract_strided_slice %0 {offsets = [8, 0], sizes = [8, 32], strides = [1, 1]} : vector<16x32xf32> to vector<8x32xf32>
    %208 = arith.addf %206, %207 : vector<8x32xf32>
    %cst_76 = arith.constant dense<0.000000e+00> : vector<8xf32>
    %209 = vector.multi_reduction <add>, %208, %cst_76 [1] : vector<8x32xf32> to vector<8xf32>
    %210 = vector.shape_cast %209 : vector<8xf32> to vector<8x1xf32>
    %cst_77 = arith.constant 3.200000e+01 : f32
    %211 = vector.broadcast %cst_77 : f32 to vector<8x1xf32>
    %212 = arith.divf %210, %211 : vector<8x1xf32>
    %213 = vector.broadcast %212 : vector<8x1xf32> to vector<8x32xf32>
    %214 = arith.subf %208, %213 : vector<8x32xf32>
    %215 = vector.broadcast %212 : vector<8x1xf32> to vector<8x32xf32>
    %216 = arith.subf %208, %215 : vector<8x32xf32>
    %217 = arith.mulf %214, %216 : vector<8x32xf32>
    %cst_78 = arith.constant dense<0.000000e+00> : vector<8xf32>
    %218 = vector.multi_reduction <add>, %217, %cst_78 [1] : vector<8x32xf32> to vector<8xf32>
    %219 = vector.shape_cast %218 : vector<8xf32> to vector<8x1xf32>
    %cst_79 = arith.constant 3.200000e+01 : f32
    %220 = vector.broadcast %cst_79 : f32 to vector<8x1xf32>
    %221 = arith.divf %219, %220 : vector<8x1xf32>
    %222 = vector.broadcast %212 : vector<8x1xf32> to vector<8x32xf32>
    %223 = arith.subf %208, %222 : vector<8x32xf32>
    %cst_80 = arith.constant 9.99999997E-7 : f32
    %224 = vector.broadcast %cst_80 : f32 to vector<8x1xf32>
    %225 = arith.addf %221, %224 : vector<8x1xf32>
    %226 = math.rsqrt %225 : vector<8x1xf32>
    %227 = vector.broadcast %226 : vector<8x1xf32> to vector<8x32xf32>
    %228 = arith.mulf %223, %227 : vector<8x32xf32>
    %229 = vector.broadcast %7 : vector<1x32xf32> to vector<8x32xf32>
    %230 = arith.mulf %228, %229 : vector<8x32xf32>
    %231 = vector.broadcast %8 : vector<1x32xf32> to vector<8x32xf32>
    %232 = arith.addf %230, %231 : vector<8x32xf32>
    %c8 = arith.constant 8 : index
    %c0_81 = arith.constant 0 : index
    %233 = vector.load %arg10[%c8, %c0_81] : memref<16x32xf32, #tpu.memory_space<vmem>>, vector<8x32xf32>
    tpu.vector_store %arg10[%c8, %c0_81], %232 {strides = array<i32>} : memref<16x32xf32, #tpu.memory_space<vmem>>, vector<8x32xf32>,
    return
  }
  func.func @transform_0(%arg0: i32) -> (i32, i32) {
    %c0_i32 = arith.constant 0 : i32
    %c0_i32_0 = arith.constant 0 : i32
    %c0_i32_1 = arith.constant 0 : i32
    return %c0_i32, %c0_i32_0 : i32, i32
  }
  func.func @transform_1(%arg0: i32) -> (i32, i32) {
    %c0_i32 = arith.constant 0 : i32
    %c0_i32_0 = arith.constant 0 : i32
    %c0_i32_1 = arith.constant 0 : i32
    return %c0_i32, %c0_i32_0 : i32, i32
  }
  func.func @transform_2(%arg0: i32) -> (i32, i32) {
    %c0_i32 = arith.constant 0 : i32
    %c0_i32_0 = arith.constant 0 : i32
    %c0_i32_1 = arith.constant 0 : i32
    return %c0_i32, %c0_i32_0 : i32, i32
  }
  func.func @transform_3(%arg0: i32) -> (i32, i32) {
    %c0_i32 = arith.constant 0 : i32
    %c0_i32_0 = arith.constant 0 : i32
    %c0_i32_1 = arith.constant 0 : i32
    return %c0_i32, %c0_i32_0 : i32, i32
  }
  func.func @transform_4(%arg0: i32) -> (i32, i32) {
    %c0_i32 = arith.constant 0 : i32
    %c0_i32_0 = arith.constant 0 : i32
    %c0_i32_1 = arith.constant 0 : i32
    return %c0_i32, %c0_i32_0 : i32, i32
  }
  func.func @transform_5(%arg0: i32) -> (i32, i32) {
    %c0_i32 = arith.constant 0 : i32
    %c0_i32_0 = arith.constant 0 : i32
    %c0_i32_1 = arith.constant 0 : i32
    return %c0_i32, %c0_i32_0 : i32, i32
  }
  func.func @transform_6(%arg0: i32) -> (i32, i32) {
    %c0_i32 = arith.constant 0 : i32
    %c0_i32_0 = arith.constant 0 : i32
    %c0_i32_1 = arith.constant 0 : i32
    return %c0_i32, %c0_i32_0 : i32, i32
  }
  func.func @transform_7(%arg0: i32) -> (i32, i32) {
    %c0_i32 = arith.constant 0 : i32
    %c0_i32_0 = arith.constant 0 : i32
    %c0_i32_1 = arith.constant 0 : i32
    return %c0_i32, %c0_i32_0 : i32, i32
  }
  func.func @transform_8(%arg0: i32) -> (i32, i32) {
    %c0_i32 = arith.constant 0 : i32
    %c0_i32_0 = arith.constant 0 : i32
    %c0_i32_1 = arith.constant 0 : i32
    return %c0_i32, %c0_i32_0 : i32, i32
  }
  func.func @transform_9(%arg0: i32) -> (i32, i32) {
    %c0_i32 = arith.constant 0 : i32
    %c0_i32_0 = arith.constant 0 : i32
    %c0_i32_1 = arith.constant 0 : i32
    return %c0_i32, %c0_i32_0 : i32, i32
  }
}

</mosaic_0001>

<llo_original>
// kernel: tpu_custom_call.1
$region0: #{tpu_custom_call.1}
  #allocation0 [shape = 'u32[]', space=smem, size = 0x4, offset = 0x4, fixed_abs, tag = 'smem constant byte address 0x4 - core index']
  #allocation1 [shape = 'u32[144,128]{1,0:T(1,128)}', space=vmem, size = 0x12000, scoped, tag = 'internal scratch']
  %s0 = inlined_call_operand.hbm [shape: f32[16,32], index: 0, kind: input, shape index: {}]
  %s1 = inlined_call_operand.hbm [shape: f32[16,32], index: 1, kind: input, shape index: {}]
  %s2 = inlined_call_operand.hbm [shape: f32[16,32], index: 2, kind: input, shape index: {}]
  %s3 = inlined_call_operand.hbm [shape: f32[32,32], index: 3, kind: input, shape index: {}]
  %s4 = inlined_call_operand.hbm [shape: f32[32,32], index: 4, kind: input, shape index: {}]
  %s5 = inlined_call_operand.hbm [shape: f32[32,32], index: 5, kind: input, shape index: {}]
  %s6 = inlined_call_operand.hbm [shape: f32[32,32], index: 6, kind: input, shape index: {}]
  %s7 = inlined_call_operand.vmem [shape: f32[1,32], index: 7, kind: input, shape index: {}]
  %s8 = inlined_call_operand.vmem [shape: f32[1,32], index: 8, kind: input, shape index: {}]
  %s9 = inlined_call_operand.hbm [shape: f32[16,32], index: 9, kind: output, shape index: {}]
  %s10 = sld [smem:[#allocation0]]
  $region74: #{tpu_custom_call.1} parent=0
    _
  %s12 = ssub.s32 1, %s10
  %s13 = scalar_select 0, %s12, %s10
  $region1: #{tpu_custom_call.1} parent=0
    #allocation2 [shape = 'u8[8192]{0}', space=vmem, size = 0x2000, scoped, tag = 'input window, operand 0, single buffered']
    #allocation3 [shape = 's32[1]{0}', space=sflag, size = 0x4, scoped, tag = 'scoped memory for tpu_custom_call.1']
    #allocation4 [shape = 's32[1]{0}', space=sflag, size = 0x4, scoped, tag = 'scoped memory for tpu_custom_call.1']
    #allocation5 [shape = 'u8[8192]{0}', space=vmem, size = 0x2000, scoped, tag = 'input window, operand 1, single buffered']
    #allocation6 [shape = 's32[1]{0}', space=sflag, size = 0x4, scoped, tag = 'scoped memory for tpu_custom_call.1']
    #allocation7 [shape = 'u8[8192]{0}', space=vmem, size = 0x2000, scoped, tag = 'input window, operand 2, single buffered']
    #allocation8 [shape = 'u8[16384]{0}', space=vmem, size = 0x4000, scoped, tag = 'input window, operand 3, single buffered']
    #allocation9 [shape = 's32[1]{0}', space=sflag, size = 0x4, scoped, tag = 'scoped memory for tpu_custom_call.1']
    #allocation10 [shape = 'u8[16384]{0}', space=vmem, size = 0x4000, scoped, tag = 'input window, operand 4, single buffered']
    #allocation11 [shape = 'u8[16384]{0}', space=vmem, size = 0x4000, scoped, tag = 'input window, operand 5, single buffered']
    #allocation12 [shape = 's32[1]{0}', space=sflag, size = 0x4, scoped, tag = 'scoped memory for tpu_custom_call.1']
    #allocation13 [shape = 'u8[16384]{0}', space=vmem, size = 0x4000, scoped, tag = 'input window, operand 6, single buffered']
    #allocation14 [shape = 'u8[8192]{0}', space=vmem, size = 0x2000, scoped, tag = 'output window, operand 0, single buffered']
    %14 = vsyncpa [#allocation3], 0
    %15 = vsyncpa [#allocation6], 0
    %16 = vsyncpa [#allocation9], 0
    %17 = vsyncpa [#allocation12], 0
    %18 = vsyncpa [#allocation4], 0
    // Predicated region
    $region2: #{tpu_custom_call.1} parent=1 // pred_check
      _
    $region3: #{tpu_custom_call.1} parent=1 // pred_check_branch
      %20 = sbr.rel (0) target = $region5
    $region4: #{tpu_custom_call.1} parent=1 // pred_region
      %s22 = ssub.s32 256, 256
      %23 = vsyncadd [#allocation3], %s22
      %s24 = sshll.u32 [#allocation2], 4
      %s25 = int_to_ptr.vmem [resolvable:$true] %s24
      %30 = dma.hbm_to_vmem [thread:$0]  %s0, 256, %s25, [#allocation3], 128, 128, 8
    $region5: #{tpu_custom_call.1} parent=1 // pred_fallthru
      _
    // Predicated region
    $region6: #{tpu_custom_call.1} parent=1 // pred_check
      _
    $region7: #{tpu_custom_call.1} parent=1 // pred_check_branch
      %32 = sbr.rel (0) target = $region9
    $region8: #{tpu_custom_call.1} parent=1 // pred_region
      %s34 = ssub.s32 256, 256
      %35 = vsyncadd [#allocation6], %s34
      %s36 = sshll.u32 [#allocation5], 4
      %s37 = int_to_ptr.vmem [resolvable:$true] %s36
      %42 = dma.hbm_to_vmem [thread:$0]  %s1, 256, %s37, [#allocation6], 128, 128, 8
    $region9: #{tpu_custom_call.1} parent=1 // pred_fallthru
      _
    // Predicated region
    $region10: #{tpu_custom_call.1} parent=1 // pred_check
      _
    $region11: #{tpu_custom_call.1} parent=1 // pred_check_branch
      %44 = sbr.rel (0) target = $region13
    $region12: #{tpu_custom_call.1} parent=1 // pred_region
      %s46 = ssub.s32 256, 256
      %47 = vsyncadd [#allocation6], %s46
      %s48 = sshll.u32 [#allocation7], 4
      %s49 = int_to_ptr.vmem [resolvable:$true] %s48
      %54 = dma.hbm_to_vmem [thread:$0]  %s2, 256, %s49, [#allocation6], 128, 128, 8
    $region13: #{tpu_custom_call.1} parent=1 // pred_fallthru
      _
    // Predicated region
    $region14: #{tpu_custom_call.1} parent=1 // pred_check
      _
    $region15: #{tpu_custom_call.1} parent=1 // pred_check_branch
      %56 = sbr.rel (0) target = $region17
    $region16: #{tpu_custom_call.1} parent=1 // pred_region
      %s58 = ssub.s32 512, 512
      %59 = vsyncadd [#allocation9], %s58
      %s60 = sshll.u32 [#allocation8], 4
      %s61 = int_to_ptr.vmem [resolvable:$true] %s60
      %66 = dma.hbm_to_vmem [thread:$0]  %s3, 512, %s61, [#allocation9], 128, 128, 8
    $region17: #{tpu_custom_call.1} parent=1 // pred_fallthru
      _
    // Predicated region
    $region18: #{tpu_custom_call.1} parent=1 // pred_check
      _
    $region19: #{tpu_custom_call.1} parent=1 // pred_check_branch
      %68 = sbr.rel (0) target = $region21
    $region20: #{tpu_custom_call.1} parent=1 // pred_region
      %s70 = ssub.s32 512, 512
      %71 = vsyncadd [#allocation9], %s70
      %s72 = sshll.u32 [#allocation10], 4
      %s73 = int_to_ptr.vmem [resolvable:$true] %s72
      %78 = dma.hbm_to_vmem [thread:$0]  %s4, 512, %s73, [#allocation9], 128, 128, 8
    $region21: #{tpu_custom_call.1} parent=1 // pred_fallthru
      _
    // Predicated region
    $region22: #{tpu_custom_call.1} parent=1 // pred_check
      _
    $region23: #{tpu_custom_call.1} parent=1 // pred_check_branch
      %80 = sbr.rel (0) target = $region25
    $region24: #{tpu_custom_call.1} parent=1 // pred_region
      %s82 = ssub.s32 512, 512
      %83 = vsyncadd [#allocation12], %s82
      %s84 = sshll.u32 [#allocation11], 4
      %s85 = int_to_ptr.vmem [resolvable:$true] %s84
      %90 = dma.hbm_to_vmem [thread:$0]  %s5, 512, %s85, [#allocation12], 128, 128, 8
    $region25: #{tpu_custom_call.1} parent=1 // pred_fallthru
      _
    // Predicated region
    $region26: #{tpu_custom_call.1} parent=1 // pred_check
      _
    $region27: #{tpu_custom_call.1} parent=1 // pred_check_branch
      %92 = sbr.rel (0) target = $region29
    $region28: #{tpu_custom_call.1} parent=1 // pred_region
      %s94 = ssub.s32 512, 512
      %95 = vsyncadd [#allocation12], %s94
      %s96 = sshll.u32 [#allocation13], 4
      %s97 = int_to_ptr.vmem [resolvable:$true] %s96
      %102 = dma.hbm_to_vmem [thread:$0]  %s6, 512, %s97, [#allocation12], 128, 128, 8
    $region29: #{tpu_custom_call.1} parent=1 // pred_fallthru
      _
    // Predicated region
    $region30: #{tpu_custom_call.1} parent=1 // pred_check
      _
    $region31: #{tpu_custom_call.1} parent=1 // pred_check_branch
      %104 = sbr.rel (0) target = $region33
    $region32: #{tpu_custom_call.1} parent=1 // pred_region
      _
    $region33: #{tpu_custom_call.1} parent=1 // pred_fallthru
      _
    // Predicated region
    $region34: #{tpu_custom_call.1} parent=1 // pred_check
      _
    $region35: #{tpu_custom_call.1} parent=1 // pred_check_branch
      %106 = sbr.rel (0) target = $region37
    $region36: #{tpu_custom_call.1} parent=1 // pred_region
      _
    $region37: #{tpu_custom_call.1} parent=1 // pred_fallthru
      _
    // Predicated region
    $region38: #{tpu_custom_call.1} parent=1 // pred_check
      _
    $region39: #{tpu_custom_call.1} parent=1 // pred_check_branch
      %108 = sbr.rel (0) target = $region41
    $region40: #{tpu_custom_call.1} parent=1 // pred_region
      %109 = dma.done [#allocation3], 256
    $region41: #{tpu_custom_call.1} parent=1 // pred_fallthru
      _
    // Predicated region
    $region42: #{tpu_custom_call.1} parent=1 // pred_check
      _
    $region43: #{tpu_custom_call.1} parent=1 // pred_check_branch
      %111 = sbr.rel (0) target = $region45
    $region44: #{tpu_custom_call.1} parent=1 // pred_region
      %112 = dma.done [#allocation6], 256
    $region45: #{tpu_custom_call.1} parent=1 // pred_fallthru
      _
    // Predicated region
    $region46: #{tpu_custom_call.1} parent=1 // pred_check
      _
    $region47: #{tpu_custom_call.1} parent=1 // pred_check_branch
      %114 = sbr.rel (0) target = $region49
    $region48: #{tpu_custom_call.1} parent=1 // pred_region
      %115 = dma.done [#allocation6], 256
    $region49: #{tpu_custom_call.1} parent=1 // pred_fallthru
      _
    // Predicated region
    $region50: #{tpu_custom_call.1} parent=1 // pred_check
      _
    $region51: #{tpu_custom_call.1} parent=1 // pred_check_branch
      %117 = sbr.rel (0) target = $region53
    $region52: #{tpu_custom_call.1} parent=1 // pred_region
      %118 = dma.done [#allocation9], 512
    $region53: #{tpu_custom_call.1} parent=1 // pred_fallthru
      _
    // Predicated region
    $region54: #{tpu_custom_call.1} parent=1 // pred_check
      _
    $region55: #{tpu_custom_call.1} parent=1 // pred_check_branch
      %120 = sbr.rel (0) target = $region57
    $region56: #{tpu_custom_call.1} parent=1 // pred_region
      %121 = dma.done [#allocation9], 512
    $region57: #{tpu_custom_call.1} parent=1 // pred_fallthru
      _
    // Predicated region
    $region58: #{tpu_custom_call.1} parent=1 // pred_check
      _
    $region59: #{tpu_custom_call.1} parent=1 // pred_check_branch
      %123 = sbr.rel (0) target = $region61
    $region60: #{tpu_custom_call.1} parent=1 // pred_region
      %124 = dma.done [#allocation12], 512
    $region61: #{tpu_custom_call.1} parent=1 // pred_fallthru
      _
    // Predicated region
    $region62: #{tpu_custom_call.1} parent=1 // pred_check
      _
    $region63: #{tpu_custom_call.1} parent=1 // pred_check_branch
      %126 = sbr.rel (0) target = $region65
    $region64: #{tpu_custom_call.1} parent=1 // pred_region
      %127 = dma.done [#allocation12], 512
    $region65: #{tpu_custom_call.1} parent=1 // pred_fallthru
      _
    %v128 = vld [vmem:[#allocation2] sm:$0xff]
    %v129 = vld [vmem:[#allocation2 + $0x8] sm:$0xff]
    %v130 = vld [vmem:[#allocation5] sm:$0xff]
    %v131 = vld [vmem:[#allocation5 + $0x8] sm:$0xff]
    %v132 = vld [vmem:[#allocation7] sm:$0xff]
    %v133 = vld [vmem:[#allocation7 + $0x8] sm:$0xff]
    %v134 = vld [vmem:[#allocation8] sm:$0xff]
    %v135 = vld [vmem:[#allocation8 + $0x8] sm:$0xff]
    %v136 = vld [vmem:[#allocation8 + $0x10] sm:$0xff]
    %v137 = vld [vmem:[#allocation8 + $0x18] sm:$0xff]
    %v138 = vld [vmem:[#allocation10] sm:$0xff]
    %v139 = vld [vmem:[#allocation10 + $0x8] sm:$0xff]
    %v140 = vld [vmem:[#allocation10 + $0x10] sm:$0xff]
    %v141 = vld [vmem:[#allocation10 + $0x18] sm:$0xff]
    %v142 = vld [vmem:[#allocation11] sm:$0xff]
    %v143 = vld [vmem:[#allocation11 + $0x8] sm:$0xff]
    %v144 = vld [vmem:[#allocation11 + $0x10] sm:$0xff]
    %v145 = vld [vmem:[#allocation11 + $0x18] sm:$0xff]
    %v146 = vld [vmem:[#allocation13] sm:$0xff]
    %v147 = vld [vmem:[#allocation13 + $0x8] sm:$0xff]
    %v148 = vld [vmem:[#allocation13 + $0x10] sm:$0xff]
    %v149 = vld [vmem:[#allocation13 + $0x18] sm:$0xff]
    %v150 = vld [vmem:[%s7] sm:$0x1]
    %v151 = vld [vmem:[%s8] sm:$0x1]
    %vm152 = vcmask 261120
    %v154 = vsel %vm152, %v128, 0
    %v157 = vsel %vm152, %v129, 0
    %159 = vmatprep.subr.mxu0 0.0
    %160 = vmatpush1.msra.mxu0 %v134
    %161 = vmatprep.subr.mxu0 0.0
    %162 = vmatpush1.msra.mxu0 %v135
    %163 = vmatprep.subr.mxu0 0.0
    %164 = vmatpush1.msra.mxu0 %v136
    %165 = vmatprep.subr.mxu0 0.0
    %166 = vmatpush1.msra.mxu0 %v137
    %167 = vmatprep.subr.mxu0 0.0
    %168 = vmatpush1.msra.mxu0 0.0
    %169 = vmatprep.subr.mxu0 0.0
    %170 = vmatpush1.msra.mxu0 0.0
    %171 = vmatprep.subr.mxu0 0.0
    %172 = vmatpush1.msra.mxu0 0.0
    %173 = vmatprep.subr.mxu0 0.0
    %174 = vmatpush1.msra.mxu0 0.0
    %175 = vmatprep.subr.mxu0 0.0
    %176 = vmatpush1.msra.mxu0 0.0
    %177 = vmatprep.subr.mxu0 0.0
    %178 = vmatpush1.msra.mxu0 0.0
    %179 = vmatprep.subr.mxu0 0.0
    %180 = vmatpush1.msra.mxu0 0.0
    %181 = vmatprep.subr.mxu0 0.0
    %182 = vmatpush1.msra.mxu0 0.0
    %183 = vmatprep.subr.mxu0 0.0
    %184 = vmatpush1.msra.mxu0 0.0
    %185 = vmatprep.subr.mxu0 0.0
    %186 = vmatpush1.msra.mxu0 0.0
    %187 = vmatprep.subr.mxu0 0.0
    %188 = vmatpush1.msra.mxu0 0.0
    %189 = vmatprep.subr.mxu0 0.0
    %190 = vmatpush1.msra.mxu0 0.0
    %191 = vmatprep.subr.mxu0 0.0
    %192 = vmatpush1.msra.mxu0 0.0
    %193 = vmatprep.subr.mxu0 0.0
    %194 = vmatpush1.msra.mxu0 0.0
    %195 = vmatprep.subr.mxu0 0.0
    %196 = vmatpush1.msra.mxu0 0.0
    %197 = vmatprep.subr.mxu0 0.0
    %198 = vmatpush1.msra.mxu0 0.0
    %199 = vmatprep.subr.mxu0 0.0
    %200 = vmatpush1.msra.mxu0 0.0
    %201 = vmatprep.subr.mxu0 0.0
    %202 = vmatpush1.msra.mxu0 0.0
    %203 = vmatprep.subr.mxu0 0.0
    %204 = vmatpush1.msra.mxu0 0.0
    %205 = vmatprep.subr.mxu0 0.0
    %206 = vmatpush1.msra.mxu0 0.0
    %207 = vmatprep.subr.mxu0 0.0
    %208 = vmatpush1.msra.mxu0 0.0
    %209 = vmatprep.subr.mxu0 0.0
    %210 = vmatpush1.msra.mxu0 0.0
    %211 = vmatprep.subr.mxu0 0.0
    %212 = vmatpush1.msra.mxu0 0.0
    %213 = vmatprep.subr.mxu0 0.0
    %214 = vmatpush1.msra.mxu0 0.0
    %215 = vmatprep.subr.mxu0 0.0
    %216 = vmatpush1.msra.mxu0 0.0
    %217 = vmatprep.subr.mxu0 0.0
    %218 = vmatpush1.msra.mxu0 0.0
    %219 = vmatprep.subr.mxu0 0.0
    %220 = vmatpush1.msra.mxu0 0.0
    %221 = vmatprep.subr.mxu0 0.0
    %222 = vmatpush1.msra.mxu0 0.0
    %223 = vmatprep.mubr.f32.mxu0 0.0
    %224 = vmatmul.mubr.f32.gmra.mrb[0].mxu0 %v154
    %v225 = vpop.f32.mrb[0].mxu0
    %v226 = vadd.f32 0.0, %v225
    %v227 = vpop.f32.mrb[0].mxu0
    %228 = vmatprep.mubr.f32.mxu0 0.0
    %229 = vmatmul.mubr.f32.gmra.mrb[0].mxu0 %v157
    %v230 = vpop.f32.mrb[0].mxu0
    %v231 = vadd.f32 0.0, %v230
    %v232 = vpop.f32.mrb[0].mxu0
    %233 = vdwg.mxu0
    %v235 = vsel %vm152, %v130, 0
    %v238 = vsel %vm152, %v131, 0
    %240 = vmatprep.subr.mxu0 0.0
    %241 = vmatpush1.msra.mxu0 %v138
    %242 = vmatprep.subr.mxu0 0.0
    %243 = vmatpush1.msra.mxu0 %v139
    %244 = vmatprep.subr.mxu0 0.0
    %245 = vmatpush1.msra.mxu0 %v140
    %246 = vmatprep.subr.mxu0 0.0
    %247 = vmatpush1.msra.mxu0 %v141
    %248 = vmatprep.subr.mxu0 0.0
    %249 = vmatpush1.msra.mxu0 0.0
    %250 = vmatprep.subr.mxu0 0.0
    %251 = vmatpush1.msra.mxu0 0.0
    %252 = vmatprep.subr.mxu0 0.0
    %253 = vmatpush1.msra.mxu0 0.0
    %254 = vmatprep.subr.mxu0 0.0
    %255 = vmatpush1.msra.mxu0 0.0
    %256 = vmatprep.subr.mxu0 0.0
    %257 = vmatpush1.msra.mxu0 0.0
    %258 = vmatprep.subr.mxu0 0.0
    %259 = vmatpush1.msra.mxu0 0.0
    %260 = vmatprep.subr.mxu0 0.0
    %261 = vmatpush1.msra.mxu0 0.0
    %262 = vmatprep.subr.mxu0 0.0
    %263 = vmatpush1.msra.mxu0 0.0
    %264 = vmatprep.subr.mxu0 0.0
    %265 = vmatpush1.msra.mxu0 0.0
    %266 = vmatprep.subr.mxu0 0.0
    %267 = vmatpush1.msra.mxu0 0.0
    %268 = vmatprep.subr.mxu0 0.0
    %269 = vmatpush1.msra.mxu0 0.0
    %270 = vmatprep.subr.mxu0 0.0
    %271 = vmatpush1.msra.mxu0 0.0
    %272 = vmatprep.subr.mxu0 0.0
    %273 = vmatpush1.msra.mxu0 0.0
    %274 = vmatprep.subr.mxu0 0.0
    %275 = vmatpush1.msra.mxu0 0.0
    %276 = vmatprep.subr.mxu0 0.0
    %277 = vmatpush1.msra.mxu0 0.0
    %278 = vmatprep.subr.mxu0 0.0
    %279 = vmatpush1.msra.mxu0 0.0
    %280 = vmatprep.subr.mxu0 0.0
    %281 = vmatpush1.msra.mxu0 0.0
    %282 = vmatprep.subr.mxu0 0.0
    %283 = vmatpush1.msra.mxu0 0.0
    %284 = vmatprep.subr.mxu0 0.0
    %285 = vmatpush1.msra.mxu0 0.0
    %286 = vmatprep.subr.mxu0 0.0
    %287 = vmatpush1.msra.mxu0 0.0
    %288 = vmatprep.subr.mxu0 0.0
    %289 = vmatpush1.msra.mxu0 0.0
    %290 = vmatprep.subr.mxu0 0.0
    %291 = vmatpush1.msra.mxu0 0.0
    %292 = vmatprep.subr.mxu0 0.0
    %293 = vmatpush1.msra.mxu0 0.0
    %294 = vmatprep.subr.mxu0 0.0
    %295 = vmatpush1.msra.mxu0 0.0
    %296 = vmatprep.subr.mxu0 0.0
    %297 = vmatpush1.msra.mxu0 0.0
    %298 = vmatprep.subr.mxu0 0.0
    %299 = vmatpush1.msra.mxu0 0.0
    %300 = vmatprep.subr.mxu0 0.0
    %301 = vmatpush1.msra.mxu0 0.0
    %302 = vmatprep.subr.mxu0 0.0
    %303 = vmatpush1.msra.mxu0 0.0
    %304 = vmatprep.mubr.f32.mxu0 0.0
    %305 = vmatmul.mubr.f32.gmra.mrb[0].mxu0 %v235
    %v306 = vpop.f32.mrb[0].mxu0
    %v307 = vadd.f32 0.0, %v306
    %v308 = vpop.f32.mrb[0].mxu0
    %309 = vmatprep.mubr.f32.mxu0 0.0
    %310 = vmatmul.mubr.f32.gmra.mrb[0].mxu0 %v238
    %v311 = vpop.f32.mrb[0].mxu0
    %v312 = vadd.f32 0.0, %v311
    %v313 = vpop.f32.mrb[0].mxu0
    %314 = vdwg.mxu0
    %v316 = vsel %vm152, %v132, 0
    %v319 = vsel %vm152, %v133, 0
    %321 = vmatprep.subr.mxu0 0.0
    %322 = vmatpush1.msra.mxu0 %v142
    %323 = vmatprep.subr.mxu0 0.0
    %324 = vmatpush1.msra.mxu0 %v143
    %325 = vmatprep.subr.mxu0 0.0
    %326 = vmatpush1.msra.mxu0 %v144
    %327 = vmatprep.subr.mxu0 0.0
    %328 = vmatpush1.msra.mxu0 %v145
    %329 = vmatprep.subr.mxu0 0.0
    %330 = vmatpush1.msra.mxu0 0.0
    %331 = vmatprep.subr.mxu0 0.0
    %332 = vmatpush1.msra.mxu0 0.0
    %333 = vmatprep.subr.mxu0 0.0
    %334 = vmatpush1.msra.mxu0 0.0
    %335 = vmatprep.subr.mxu0 0.0
    %336 = vmatpush1.msra.mxu0 0.0
    %337 = vmatprep.subr.mxu0 0.0
    %338 = vmatpush1.msra.mxu0 0.0
    %339 = vmatprep.subr.mxu0 0.0
    %340 = vmatpush1.msra.mxu0 0.0
    %341 = vmatprep.subr.mxu0 0.0
    %342 = vmatpush1.msra.mxu0 0.0
    %343 = vmatprep.subr.mxu0 0.0
    %344 = vmatpush1.msra.mxu0 0.0
    %345 = vmatprep.subr.mxu0 0.0
    %346 = vmatpush1.msra.mxu0 0.0
    %347 = vmatprep.subr.mxu0 0.0
    %348 = vmatpush1.msra.mxu0 0.0
    %349 = vmatprep.subr.mxu0 0.0
    %350 = vmatpush1.msra.mxu0 0.0
    %351 = vmatprep.subr.mxu0 0.0
    %352 = vmatpush1.msra.mxu0 0.0
    %353 = vmatprep.subr.mxu0 0.0
    %354 = vmatpush1.msra.mxu0 0.0
    %355 = vmatprep.subr.mxu0 0.0
    %356 = vmatpush1.msra.mxu0 0.0
    %357 = vmatprep.subr.mxu0 0.0
    %358 = vmatpush1.msra.mxu0 0.0
    %359 = vmatprep.subr.mxu0 0.0
    %360 = vmatpush1.msra.mxu0 0.0
    %361 = vmatprep.subr.mxu0 0.0
    %362 = vmatpush1.msra.mxu0 0.0
    %363 = vmatprep.subr.mxu0 0.0
    %364 = vmatpush1.msra.mxu0 0.0
    %365 = vmatprep.subr.mxu0 0.0
    %366 = vmatpush1.msra.mxu0 0.0
    %367 = vmatprep.subr.mxu0 0.0
    %368 = vmatpush1.msra.mxu0 0.0
    %369 = vmatprep.subr.mxu0 0.0
    %370 = vmatpush1.msra.mxu0 0.0
    %371 = vmatprep.subr.mxu0 0.0
    %372 = vmatpush1.msra.mxu0 0.0
    %373 = vmatprep.subr.mxu0 0.0
    %374 = vmatpush1.msra.mxu0 0.0
    %375 = vmatprep.subr.mxu0 0.0
    %376 = vmatpush1.msra.mxu0 0.0
    %377 = vmatprep.subr.mxu0 0.0
    %378 = vmatpush1.msra.mxu0 0.0
    %379 = vmatprep.subr.mxu0 0.0
    %380 = vmatpush1.msra.mxu0 0.0
    %381 = vmatprep.subr.mxu0 0.0
    %382 = vmatpush1.msra.mxu0 0.0
    %383 = vmatprep.subr.mxu0 0.0
    %384 = vmatpush1.msra.mxu0 0.0
    %385 = vmatprep.mubr.f32.mxu0 0.0
    %386 = vmatmul.mubr.f32.gmra.mrb[0].mxu0 %v316
    %v387 = vpop.f32.mrb[0].mxu0
    %v388 = vadd.f32 0.0, %v387
    %v389 = vpop.f32.mrb[0].mxu0
    %390 = vmatprep.mubr.f32.mxu0 0.0
    %391 = vmatmul.mubr.f32.gmra.mrb[0].mxu0 %v319
    %v392 = vpop.f32.mrb[0].mxu0
    %v393 = vadd.f32 0.0, %v392
    %v394 = vpop.f32.mrb[0].mxu0
    %395 = vdwg.mxu0
    %v396 = vmul.f32 %v226, 0.35355338
    %vm397 = vcmask 64512
    %v399 = vsel %vm397, %v396, 0
    %v402 = vsel %vm397, %v307, 0
    %404 = vmatprep.subr.mxu0 0.0
    %405 = vmatpush1.xpose.msra.mxu0 %v402
    %406 = vmatprep.subr.mxu0 0.0
    %407 = vmatpush1.xpose.msra.mxu0 0.0
    %408 = vmatprep.subr.mxu0 0.0
    %409 = vmatpush1.xpose.msra.mxu0 0.0
    %410 = vmatprep.subr.mxu0 0.0
    %411 = vmatpush1.xpose.msra.mxu0 0.0
    %412 = vmatprep.subr.mxu0 0.0
    %413 = vmatpush1.xpose.msra.mxu0 0.0
    %414 = vmatprep.subr.mxu0 0.0
    %415 = vmatpush1.xpose.msra.mxu0 0.0
    %416 = vmatprep.subr.mxu0 0.0
    %417 = vmatpush1.xpose.msra.mxu0 0.0
    %418 = vmatprep.subr.mxu0 0.0
    %419 = vmatpush1.xpose.msra.mxu0 0.0
    %420 = vmatprep.subr.mxu0 0.0
    %421 = vmatpush1.xpose.msra.mxu0 0.0
    %422 = vmatprep.subr.mxu0 0.0
    %423 = vmatpush1.xpose.msra.mxu0 0.0
    %424 = vmatprep.subr.mxu0 0.0
    %425 = vmatpush1.xpose.msra.mxu0 0.0
    %426 = vmatprep.subr.mxu0 0.0
    %427 = vmatpush1.xpose.msra.mxu0 0.0
    %428 = vmatprep.subr.mxu0 0.0
    %429 = vmatpush1.xpose.msra.mxu0 0.0
    %430 = vmatprep.subr.mxu0 0.0
    %431 = vmatpush1.xpose.msra.mxu0 0.0
    %432 = vmatprep.subr.mxu0 0.0
    %433 = vmatpush1.xpose.msra.mxu0 0.0
    %434 = vmatprep.subr.mxu0 0.0
    %435 = vmatpush1.xpose.msra.mxu0 0.0
    %436 = vmatprep.subr.mxu0 0.0
    %437 = vmatpush1.xpose.msra.mxu0 0.0
    %438 = vmatprep.subr.mxu0 0.0
    %439 = vmatpush1.xpose.msra.mxu0 0.0
    %440 = vmatprep.subr.mxu0 0.0
    %441 = vmatpush1.xpose.msra.mxu0 0.0
    %442 = vmatprep.subr.mxu0 0.0
    %443 = vmatpush1.xpose.msra.mxu0 0.0
    %444 = vmatprep.subr.mxu0 0.0
    %445 = vmatpush1.xpose.msra.mxu0 0.0
    %446 = vmatprep.subr.mxu0 0.0
    %447 = vmatpush1.xpose.msra.mxu0 0.0
    %448 = vmatprep.subr.mxu0 0.0
    %449 = vmatpush1.xpose.msra.mxu0 0.0
    %450 = vmatprep.subr.mxu0 0.0
    %451 = vmatpush1.xpose.msra.mxu0 0.0
    %452 = vmatprep.subr.mxu0 0.0
    %453 = vmatpush1.xpose.msra.mxu0 0.0
    %454 = vmatprep.subr.mxu0 0.0
    %455 = vmatpush1.xpose.msra.mxu0 0.0
    %456 = vmatprep.subr.mxu0 0.0
    %457 = vmatpush1.xpose.msra.mxu0 0.0
    %458 = vmatprep.subr.mxu0 0.0
    %459 = vmatpush1.xpose.msra.mxu0 0.0
    %460 = vmatprep.subr.mxu0 0.0
    %461 = vmatpush1.xpose.msra.mxu0 0.0
    %462 = vmatprep.subr.mxu0 0.0
    %463 = vmatpush1.xpose.msra.mxu0 0.0
    %464 = vmatprep.subr.mxu0 0.0
    %465 = vmatpush1.xpose.msra.mxu0 0.0
    %466 = vmatprep.subr.mxu0 0.0
    %467 = vmatpush1.xpose.msra.mxu0 0.0
    %468 = vmatprep.mubr.f32.mxu0 0.0
    %469 = vmatmul.mubr.f32.gmra.mrb[0].mxu0 %v399
    %v470 = vpop.f32.mrb[0].mxu0
    %v471 = vadd.f32 0.0, %v470
    %v472 = vpop.f32.mrb[0].mxu0
    %473 = vdwg.mxu0
    %v474 = vsel %vm397, %v471, -inf
    %475 = vmax.xlane.f32.xlu0 %v474
    %v476 = vpop.xlane.xlu0 %475
    %v477 = vsub.f32 %v471, %v476
    %v478 = vmul.f32 %v477, 1.442695
    %v479 = vpow.pop %v478
    %v480 = vsel %vm397, %v479, 0.0
    %481 = vadd.xlane.f32.xlu0 %v480
    %v482 = vpop.xlane.xlu0 %481
    %v483 = vrcp.pop %v482
    %v484 = vmul.f32 %v479, %v483
    %v486 = vsel %vm397, %v484, 0
    %488 = vmatprep.subr.mxu0 0.0
    %489 = vmatpush1.msra.mxu0 %v388
    %490 = vmatprep.subr.mxu0 0.0
    %491 = vmatpush1.msra.mxu0 0.0
    %492 = vmatprep.subr.mxu0 0.0
    %493 = vmatpush1.msra.mxu0 0.0
    %494 = vmatprep.subr.mxu0 0.0
    %495 = vmatpush1.msra.mxu0 0.0
    %496 = vmatprep.subr.mxu0 0.0
    %497 = vmatpush1.msra.mxu0 0.0
    %498 = vmatprep.subr.mxu0 0.0
    %499 = vmatpush1.msra.mxu0 0.0
    %500 = vmatprep.subr.mxu0 0.0
    %501 = vmatpush1.msra.mxu0 0.0
    %502 = vmatprep.subr.mxu0 0.0
    %503 = vmatpush1.msra.mxu0 0.0
    %504 = vmatprep.subr.mxu0 0.0
    %505 = vmatpush1.msra.mxu0 0.0
    %506 = vmatprep.subr.mxu0 0.0
    %507 = vmatpush1.msra.mxu0 0.0
    %508 = vmatprep.subr.mxu0 0.0
    %509 = vmatpush1.msra.mxu0 0.0
    %510 = vmatprep.subr.mxu0 0.0
    %511 = vmatpush1.msra.mxu0 0.0
    %512 = vmatprep.subr.mxu0 0.0
    %513 = vmatpush1.msra.mxu0 0.0
    %514 = vmatprep.subr.mxu0 0.0
    %515 = vmatpush1.msra.mxu0 0.0
    %516 = vmatprep.subr.mxu0 0.0
    %517 = vmatpush1.msra.mxu0 0.0
    %518 = vmatprep.subr.mxu0 0.0
    %519 = vmatpush1.msra.mxu0 0.0
    %520 = vmatprep.subr.mxu0 0.0
    %521 = vmatpush1.msra.mxu0 0.0
    %522 = vmatprep.subr.mxu0 0.0
    %523 = vmatpush1.msra.mxu0 0.0
    %524 = vmatprep.subr.mxu0 0.0
    %525 = vmatpush1.msra.mxu0 0.0
    %526 = vmatprep.subr.mxu0 0.0
    %527 = vmatpush1.msra.mxu0 0.0
    %528 = vmatprep.subr.mxu0 0.0
    %529 = vmatpush1.msra.mxu0 0.0
    %530 = vmatprep.subr.mxu0 0.0
    %531 = vmatpush1.msra.mxu0 0.0
    %532 = vmatprep.subr.mxu0 0.0
    %533 = vmatpush1.msra.mxu0 0.0
    %534 = vmatprep.subr.mxu0 0.0
    %535 = vmatpush1.msra.mxu0 0.0
    %536 = vmatprep.subr.mxu0 0.0
    %537 = vmatpush1.msra.mxu0 0.0
    %538 = vmatprep.subr.mxu0 0.0
    %539 = vmatpush1.msra.mxu0 0.0
    %540 = vmatprep.subr.mxu0 0.0
    %541 = vmatpush1.msra.mxu0 0.0
    %542 = vmatprep.subr.mxu0 0.0
    %543 = vmatpush1.msra.mxu0 0.0
    %544 = vmatprep.subr.mxu0 0.0
    %545 = vmatpush1.msra.mxu0 0.0
    %546 = vmatprep.subr.mxu0 0.0
    %547 = vmatpush1.msra.mxu0 0.0
    %548 = vmatprep.subr.mxu0 0.0
    %549 = vmatpush1.msra.mxu0 0.0
    %550 = vmatprep.subr.mxu0 0.0
    %551 = vmatpush1.msra.mxu0 0.0
    %552 = vmatprep.mubr.f32.mxu0 0.0
    %553 = vmatmul.mubr.f32.gmra.mrb[0].mxu0 %v486
    %v554 = vpop.f32.mrb[0].mxu0
    %v555 = vadd.f32 0.0, %v554
    %v556 = vpop.f32.mrb[0].mxu0
    %557 = vdwg.mxu0
    %558 = vrot.lane.b32.xlu0 %v396, 120
    %v559 = vpop.permute.xlu0 %558
    %560 = vrot.lane.b32.xlu0 %v307, 120
    %v561 = vpop.permute.xlu0 %560
    %v562 = vsel %vm397, %v559, 0
    %v564 = vsel %vm397, %v561, 0
    %566 = vmatprep.subr.mxu0 0.0
    %567 = vmatpush1.xpose.msra.mxu0 %v564
    %568 = vmatprep.subr.mxu0 0.0
    %569 = vmatpush1.xpose.msra.mxu0 0.0
    %570 = vmatprep.subr.mxu0 0.0
    %571 = vmatpush1.xpose.msra.mxu0 0.0
    %572 = vmatprep.subr.mxu0 0.0
    %573 = vmatpush1.xpose.msra.mxu0 0.0
    %574 = vmatprep.subr.mxu0 0.0
    %575 = vmatpush1.xpose.msra.mxu0 0.0
    %576 = vmatprep.subr.mxu0 0.0
    %577 = vmatpush1.xpose.msra.mxu0 0.0
    %578 = vmatprep.subr.mxu0 0.0
    %579 = vmatpush1.xpose.msra.mxu0 0.0
    %580 = vmatprep.subr.mxu0 0.0
    %581 = vmatpush1.xpose.msra.mxu0 0.0
    %582 = vmatprep.subr.mxu0 0.0
    %583 = vmatpush1.xpose.msra.mxu0 0.0
    %584 = vmatprep.subr.mxu0 0.0
    %585 = vmatpush1.xpose.msra.mxu0 0.0
    %586 = vmatprep.subr.mxu0 0.0
    %587 = vmatpush1.xpose.msra.mxu0 0.0
    %588 = vmatprep.subr.mxu0 0.0
    %589 = vmatpush1.xpose.msra.mxu0 0.0
    %590 = vmatprep.subr.mxu0 0.0
    %591 = vmatpush1.xpose.msra.mxu0 0.0
    %592 = vmatprep.subr.mxu0 0.0
    %593 = vmatpush1.xpose.msra.mxu0 0.0
    %594 = vmatprep.subr.mxu0 0.0
    %595 = vmatpush1.xpose.msra.mxu0 0.0
    %596 = vmatprep.subr.mxu0 0.0
    %597 = vmatpush1.xpose.msra.mxu0 0.0
    %598 = vmatprep.subr.mxu0 0.0
    %599 = vmatpush1.xpose.msra.mxu0 0.0
    %600 = vmatprep.subr.mxu0 0.0
    %601 = vmatpush1.xpose.msra.mxu0 0.0
    %602 = vmatprep.subr.mxu0 0.0
    %603 = vmatpush1.xpose.msra.mxu0 0.0
    %604 = vmatprep.subr.mxu0 0.0
    %605 = vmatpush1.xpose.msra.mxu0 0.0
    %606 = vmatprep.subr.mxu0 0.0
    %607 = vmatpush1.xpose.msra.mxu0 0.0
    %608 = vmatprep.subr.mxu0 0.0
    %609 = vmatpush1.xpose.msra.mxu0 0.0
    %610 = vmatprep.subr.mxu0 0.0
    %611 = vmatpush1.xpose.msra.mxu0 0.0
    %612 = vmatprep.subr.mxu0 0.0
    %613 = vmatpush1.xpose.msra.mxu0 0.0
    %614 = vmatprep.subr.mxu0 0.0
    %615 = vmatpush1.xpose.msra.mxu0 0.0
    %616 = vmatprep.subr.mxu0 0.0
    %617 = vmatpush1.xpose.msra.mxu0 0.0
    %618 = vmatprep.subr.mxu0 0.0
    %619 = vmatpush1.xpose.msra.mxu0 0.0
    %620 = vmatprep.subr.mxu0 0.0
    %621 = vmatpush1.xpose.msra.mxu0 0.0
    %622 = vmatprep.subr.mxu0 0.0
    %623 = vmatpush1.xpose.msra.mxu0 0.0
    %624 = vmatprep.subr.mxu0 0.0
    %625 = vmatpush1.xpose.msra.mxu0 0.0
    %626 = vmatprep.subr.mxu0 0.0
    %627 = vmatpush1.xpose.msra.mxu0 0.0
    %628 = vmatprep.subr.mxu0 0.0
    %629 = vmatpush1.xpose.msra.mxu0 0.0
    %630 = vmatprep.mubr.f32.mxu0 0.0
    %631 = vmatmul.mubr.f32.gmra.mrb[0].mxu0 %v562
    %v632 = vpop.f32.mrb[0].mxu0
    %v633 = vadd.f32 0.0, %v632
    %v634 = vpop.f32.mrb[0].mxu0
    %635 = vdwg.mxu0
    %v636 = vsel %vm397, %v633, -inf
    %637 = vmax.xlane.f32.xlu0 %v636
    %v638 = vpop.xlane.xlu0 %637
    %v639 = vsub.f32 %v633, %v638
    %v640 = vmul.f32 %v639, 1.442695
    %v641 = vpow.pop %v640
    %v642 = vsel %vm397, %v641, 0.0
    %643 = vadd.xlane.f32.xlu0 %v642
    %v644 = vpop.xlane.xlu0 %643
    %v645 = vrcp.pop %v644
    %v646 = vmul.f32 %v641, %v645
    %648 = vrot.lane.b32.xlu0 %v388, 120
    %v649 = vpop.permute.xlu0 %648
    %v652 = vsel %vm397, %v646, 0
    %654 = vmatprep.subr.mxu0 0.0
    %655 = vmatpush1.msra.mxu0 %v649
    %656 = vmatprep.subr.mxu0 0.0
    %657 = vmatpush1.msra.mxu0 0.0
    %658 = vmatprep.subr.mxu0 0.0
    %659 = vmatpush1.msra.mxu0 0.0
    %660 = vmatprep.subr.mxu0 0.0
    %661 = vmatpush1.msra.mxu0 0.0
    %662 = vmatprep.subr.mxu0 0.0
    %663 = vmatpush1.msra.mxu0 0.0
    %664 = vmatprep.subr.mxu0 0.0
    %665 = vmatpush1.msra.mxu0 0.0
    %666 = vmatprep.subr.mxu0 0.0
    %667 = vmatpush1.msra.mxu0 0.0
    %668 = vmatprep.subr.mxu0 0.0
    %669 = vmatpush1.msra.mxu0 0.0
    %670 = vmatprep.subr.mxu0 0.0
    %671 = vmatpush1.msra.mxu0 0.0
    %672 = vmatprep.subr.mxu0 0.0
    %673 = vmatpush1.msra.mxu0 0.0
    %674 = vmatprep.subr.mxu0 0.0
    %675 = vmatpush1.msra.mxu0 0.0
    %676 = vmatprep.subr.mxu0 0.0
    %677 = vmatpush1.msra.mxu0 0.0
    %678 = vmatprep.subr.mxu0 0.0
    %679 = vmatpush1.msra.mxu0 0.0
    %680 = vmatprep.subr.mxu0 0.0
    %681 = vmatpush1.msra.mxu0 0.0
    %682 = vmatprep.subr.mxu0 0.0
    %683 = vmatpush1.msra.mxu0 0.0
    %684 = vmatprep.subr.mxu0 0.0
    %685 = vmatpush1.msra.mxu0 0.0
    %686 = vmatprep.subr.mxu0 0.0
    %687 = vmatpush1.msra.mxu0 0.0
    %688 = vmatprep.subr.mxu0 0.0
    %689 = vmatpush1.msra.mxu0 0.0
    %690 = vmatprep.subr.mxu0 0.0
    %691 = vmatpush1.msra.mxu0 0.0
    %692 = vmatprep.subr.mxu0 0.0
    %693 = vmatpush1.msra.mxu0 0.0
    %694 = vmatprep.subr.mxu0 0.0
    %695 = vmatpush1.msra.mxu0 0.0
    %696 = vmatprep.subr.mxu0 0.0
    %697 = vmatpush1.msra.mxu0 0.0
    %698 = vmatprep.subr.mxu0 0.0
    %699 = vmatpush1.msra.mxu0 0.0
    %700 = vmatprep.subr.mxu0 0.0
    %701 = vmatpush1.msra.mxu0 0.0
    %702 = vmatprep.subr.mxu0 0.0
    %703 = vmatpush1.msra.mxu0 0.0
    %704 = vmatprep.subr.mxu0 0.0
    %705 = vmatpush1.msra.mxu0 0.0
    %706 = vmatprep.subr.mxu0 0.0
    %707 = vmatpush1.msra.mxu0 0.0
    %708 = vmatprep.subr.mxu0 0.0
    %709 = vmatpush1.msra.mxu0 0.0
    %710 = vmatprep.subr.mxu0 0.0
    %711 = vmatpush1.msra.mxu0 0.0
    %712 = vmatprep.subr.mxu0 0.0
    %713 = vmatpush1.msra.mxu0 0.0
    %714 = vmatprep.subr.mxu0 0.0
    %715 = vmatpush1.msra.mxu0 0.0
    %716 = vmatprep.subr.mxu0 0.0
    %717 = vmatpush1.msra.mxu0 0.0
    %718 = vmatprep.mubr.f32.mxu0 0.0
    %719 = vmatmul.mubr.f32.gmra.mrb[0].mxu0 %v652
    %v720 = vpop.f32.mrb[0].mxu0
    %v721 = vadd.f32 0.0, %v720
    %v722 = vpop.f32.mrb[0].mxu0
    %723 = vdwg.mxu0
    %v725 = vsel %vm397, %v721, 0
    %727 = vmatprep.subr.mxu0 0.0
    %728 = vmatpush1.msra.mxu0 %v147
    %729 = vmatprep.subr.mxu0 0.0
    %730 = vmatpush1.msra.mxu0 0.0
    %731 = vmatprep.subr.mxu0 0.0
    %732 = vmatpush1.msra.mxu0 0.0
    %733 = vmatprep.subr.mxu0 0.0
    %734 = vmatpush1.msra.mxu0 0.0
    %735 = vmatprep.subr.mxu0 0.0
    %736 = vmatpush1.msra.mxu0 0.0
    %737 = vmatprep.subr.mxu0 0.0
    %738 = vmatpush1.msra.mxu0 0.0
    %739 = vmatprep.subr.mxu0 0.0
    %740 = vmatpush1.msra.mxu0 0.0
    %741 = vmatprep.subr.mxu0 0.0
    %742 = vmatpush1.msra.mxu0 0.0
    %743 = vmatprep.subr.mxu0 0.0
    %744 = vmatpush1.msra.mxu0 0.0
    %745 = vmatprep.subr.mxu0 0.0
    %746 = vmatpush1.msra.mxu0 0.0
    %747 = vmatprep.subr.mxu0 0.0
    %748 = vmatpush1.msra.mxu0 0.0
    %749 = vmatprep.subr.mxu0 0.0
    %750 = vmatpush1.msra.mxu0 0.0
    %751 = vmatprep.subr.mxu0 0.0
    %752 = vmatpush1.msra.mxu0 0.0
    %753 = vmatprep.subr.mxu0 0.0
    %754 = vmatpush1.msra.mxu0 0.0
    %755 = vmatprep.subr.mxu0 0.0
    %756 = vmatpush1.msra.mxu0 0.0
    %757 = vmatprep.subr.mxu0 0.0
    %758 = vmatpush1.msra.mxu0 0.0
    %759 = vmatprep.subr.mxu0 0.0
    %760 = vmatpush1.msra.mxu0 0.0
    %761 = vmatprep.subr.mxu0 0.0
    %762 = vmatpush1.msra.mxu0 0.0
    %763 = vmatprep.subr.mxu0 0.0
    %764 = vmatpush1.msra.mxu0 0.0
    %765 = vmatprep.subr.mxu0 0.0
    %766 = vmatpush1.msra.mxu0 0.0
    %767 = vmatprep.subr.mxu0 0.0
    %768 = vmatpush1.msra.mxu0 0.0
    %769 = vmatprep.subr.mxu0 0.0
    %770 = vmatpush1.msra.mxu0 0.0
    %771 = vmatprep.subr.mxu0 0.0
    %772 = vmatpush1.msra.mxu0 0.0
    %773 = vmatprep.subr.mxu0 0.0
    %774 = vmatpush1.msra.mxu0 0.0
    %775 = vmatprep.subr.mxu0 0.0
    %776 = vmatpush1.msra.mxu0 0.0
    %777 = vmatprep.subr.mxu0 0.0
    %778 = vmatpush1.msra.mxu0 0.0
    %779 = vmatprep.subr.mxu0 0.0
    %780 = vmatpush1.msra.mxu0 0.0
    %781 = vmatprep.subr.mxu0 0.0
    %782 = vmatpush1.msra.mxu0 0.0
    %783 = vmatprep.subr.mxu0 0.0
    %784 = vmatpush1.msra.mxu0 0.0
    %785 = vmatprep.subr.mxu0 0.0
    %786 = vmatpush1.msra.mxu0 0.0
    %787 = vmatprep.subr.mxu0 0.0
    %788 = vmatpush1.msra.mxu0 0.0
    %789 = vmatprep.subr.mxu0 0.0
    %790 = vmatpush1.msra.mxu0 0.0
    %791 = vmatprep.mubr.f32.mxu0 0.0
    %792 = vmatmul.mubr.f32.gmra.mrb[0].mxu0 %v725
    %v793 = vpop.f32.mrb[0].mxu0
    %v794 = vadd.f32 0.0, %v793
    %v795 = vpop.f32.mrb[0].mxu0
    %796 = vdwg.mxu0
    %v798 = vsel %vm397, %v555, 0
    %800 = vmatprep.subr.mxu0 0.0
    %801 = vmatpush1.msra.mxu0 %v146
    %802 = vmatprep.subr.mxu0 0.0
    %803 = vmatpush1.msra.mxu0 0.0
    %804 = vmatprep.subr.mxu0 0.0
    %805 = vmatpush1.msra.mxu0 0.0
    %806 = vmatprep.subr.mxu0 0.0
    %807 = vmatpush1.msra.mxu0 0.0
    %808 = vmatprep.subr.mxu0 0.0
    %809 = vmatpush1.msra.mxu0 0.0
    %810 = vmatprep.subr.mxu0 0.0
    %811 = vmatpush1.msra.mxu0 0.0
    %812 = vmatprep.subr.mxu0 0.0
    %813 = vmatpush1.msra.mxu0 0.0
    %814 = vmatprep.subr.mxu0 0.0
    %815 = vmatpush1.msra.mxu0 0.0
    %816 = vmatprep.subr.mxu0 0.0
    %817 = vmatpush1.msra.mxu0 0.0
    %818 = vmatprep.subr.mxu0 0.0
    %819 = vmatpush1.msra.mxu0 0.0
    %820 = vmatprep.subr.mxu0 0.0
    %821 = vmatpush1.msra.mxu0 0.0
    %822 = vmatprep.subr.mxu0 0.0
    %823 = vmatpush1.msra.mxu0 0.0
    %824 = vmatprep.subr.mxu0 0.0
    %825 = vmatpush1.msra.mxu0 0.0
    %826 = vmatprep.subr.mxu0 0.0
    %827 = vmatpush1.msra.mxu0 0.0
    %828 = vmatprep.subr.mxu0 0.0
    %829 = vmatpush1.msra.mxu0 0.0
    %830 = vmatprep.subr.mxu0 0.0
    %831 = vmatpush1.msra.mxu0 0.0
    %832 = vmatprep.subr.mxu0 0.0
    %833 = vmatpush1.msra.mxu0 0.0
    %834 = vmatprep.subr.mxu0 0.0
    %835 = vmatpush1.msra.mxu0 0.0
    %836 = vmatprep.subr.mxu0 0.0
    %837 = vmatpush1.msra.mxu0 0.0
    %838 = vmatprep.subr.mxu0 0.0
    %839 = vmatpush1.msra.mxu0 0.0
    %840 = vmatprep.subr.mxu0 0.0
    %841 = vmatpush1.msra.mxu0 0.0
    %842 = vmatprep.subr.mxu0 0.0
    %843 = vmatpush1.msra.mxu0 0.0
    %844 = vmatprep.subr.mxu0 0.0
    %845 = vmatpush1.msra.mxu0 0.0
    %846 = vmatprep.subr.mxu0 0.0
    %847 = vmatpush1.msra.mxu0 0.0
    %848 = vmatprep.subr.mxu0 0.0
    %849 = vmatpush1.msra.mxu0 0.0
    %850 = vmatprep.subr.mxu0 0.0
    %851 = vmatpush1.msra.mxu0 0.0
    %852 = vmatprep.subr.mxu0 0.0
    %853 = vmatpush1.msra.mxu0 0.0
    %854 = vmatprep.subr.mxu0 0.0
    %855 = vmatpush1.msra.mxu0 0.0
    %856 = vmatprep.subr.mxu0 0.0
    %857 = vmatpush1.msra.mxu0 0.0
    %858 = vmatprep.subr.mxu0 0.0
    %859 = vmatpush1.msra.mxu0 0.0
    %860 = vmatprep.subr.mxu0 0.0
    %861 = vmatpush1.msra.mxu0 0.0
    %862 = vmatprep.subr.mxu0 0.0
    %863 = vmatpush1.msra.mxu0 0.0
    %864 = vmatprep.mubr.f32.mxu0 0.0
    %865 = vmatmul.mubr.f32.gmra.mrb[0].mxu0 %v798
    %v866 = vpop.f32.mrb[0].mxu0
    %v867 = vadd.f32 %v794, %v866
    %v868 = vpop.f32.mrb[0].mxu0
    %869 = vdwg.mxu0
    %870 = vrot.lane.b32.xlu0 %v396, 112
    %v871 = vpop.permute.xlu0 %870
    %872 = vrot.lane.b32.xlu0 %v307, 112
    %v873 = vpop.permute.xlu0 %872
    %v874 = vsel %vm397, %v871, 0
    %v876 = vsel %vm397, %v873, 0
    %878 = vmatprep.subr.mxu0 0.0
    %879 = vmatpush1.xpose.msra.mxu0 %v876
    %880 = vmatprep.subr.mxu0 0.0
    %881 = vmatpush1.xpose.msra.mxu0 0.0
    %882 = vmatprep.subr.mxu0 0.0
    %883 = vmatpush1.xpose.msra.mxu0 0.0
    %884 = vmatprep.subr.mxu0 0.0
    %885 = vmatpush1.xpose.msra.mxu0 0.0
    %886 = vmatprep.subr.mxu0 0.0
    %887 = vmatpush1.xpose.msra.mxu0 0.0
    %888 = vmatprep.subr.mxu0 0.0
    %889 = vmatpush1.xpose.msra.mxu0 0.0
    %890 = vmatprep.subr.mxu0 0.0
    %891 = vmatpush1.xpose.msra.mxu0 0.0
    %892 = vmatprep.subr.mxu0 0.0
    %893 = vmatpush1.xpose.msra.mxu0 0.0
    %894 = vmatprep.subr.mxu0 0.0
    %895 = vmatpush1.xpose.msra.mxu0 0.0
    %896 = vmatprep.subr.mxu0 0.0
    %897 = vmatpush1.xpose.msra.mxu0 0.0
    %898 = vmatprep.subr.mxu0 0.0
    %899 = vmatpush1.xpose.msra.mxu0 0.0
    %900 = vmatprep.subr.mxu0 0.0
    %901 = vmatpush1.xpose.msra.mxu0 0.0
    %902 = vmatprep.subr.mxu0 0.0
    %903 = vmatpush1.xpose.msra.mxu0 0.0
    %904 = vmatprep.subr.mxu0 0.0
    %905 = vmatpush1.xpose.msra.mxu0 0.0
    %906 = vmatprep.subr.mxu0 0.0
    %907 = vmatpush1.xpose.msra.mxu0 0.0
    %908 = vmatprep.subr.mxu0 0.0
    %909 = vmatpush1.xpose.msra.mxu0 0.0
    %910 = vmatprep.subr.mxu0 0.0
    %911 = vmatpush1.xpose.msra.mxu0 0.0
    %912 = vmatprep.subr.mxu0 0.0
    %913 = vmatpush1.xpose.msra.mxu0 0.0
    %914 = vmatprep.subr.mxu0 0.0
    %915 = vmatpush1.xpose.msra.mxu0 0.0
    %916 = vmatprep.subr.mxu0 0.0
    %917 = vmatpush1.xpose.msra.mxu0 0.0
    %918 = vmatprep.subr.mxu0 0.0
    %919 = vmatpush1.xpose.msra.mxu0 0.0
    %920 = vmatprep.subr.mxu0 0.0
    %921 = vmatpush1.xpose.msra.mxu0 0.0
    %922 = vmatprep.subr.mxu0 0.0
    %923 = vmatpush1.xpose.msra.mxu0 0.0
    %924 = vmatprep.subr.mxu0 0.0
    %925 = vmatpush1.xpose.msra.mxu0 0.0
    %926 = vmatprep.subr.mxu0 0.0
    %927 = vmatpush1.xpose.msra.mxu0 0.0
    %928 = vmatprep.subr.mxu0 0.0
    %929 = vmatpush1.xpose.msra.mxu0 0.0
    %930 = vmatprep.subr.mxu0 0.0
    %931 = vmatpush1.xpose.msra.mxu0 0.0
    %932 = vmatprep.subr.mxu0 0.0
    %933 = vmatpush1.xpose.msra.mxu0 0.0
    %934 = vmatprep.subr.mxu0 0.0
    %935 = vmatpush1.xpose.msra.mxu0 0.0
    %936 = vmatprep.subr.mxu0 0.0
    %937 = vmatpush1.xpose.msra.mxu0 0.0
    %938 = vmatprep.subr.mxu0 0.0
    %939 = vmatpush1.xpose.msra.mxu0 0.0
    %940 = vmatprep.subr.mxu0 0.0
    %941 = vmatpush1.xpose.msra.mxu0 0.0
    %942 = vmatprep.mubr.f32.mxu0 0.0
    %943 = vmatmul.mubr.f32.gmra.mrb[0].mxu0 %v874
    %v944 = vpop.f32.mrb[0].mxu0
    %v945 = vadd.f32 0.0, %v944
    %v946 = vpop.f32.mrb[0].mxu0
    %947 = vdwg.mxu0
    %v948 = vsel %vm397, %v945, -inf
    %949 = vmax.xlane.f32.xlu0 %v948
    %v950 = vpop.xlane.xlu0 %949
    %v951 = vsub.f32 %v945, %v950
    %v952 = vmul.f32 %v951, 1.442695
    %v953 = vpow.pop %v952
    %v954 = vsel %vm397, %v953, 0.0
    %955 = vadd.xlane.f32.xlu0 %v954
    %v956 = vpop.xlane.xlu0 %955
    %v957 = vrcp.pop %v956
    %v958 = vmul.f32 %v953, %v957
    %959 = vrot.lane.b32.xlu0 %v388, 112
    %v960 = vpop.permute.xlu0 %959
    %v963 = vsel %vm397, %v958, 0
    %965 = vmatprep.subr.mxu0 0.0
    %966 = vmatpush1.msra.mxu0 %v960
    %967 = vmatprep.subr.mxu0 0.0
    %968 = vmatpush1.msra.mxu0 0.0
    %969 = vmatprep.subr.mxu0 0.0
    %970 = vmatpush1.msra.mxu0 0.0
    %971 = vmatprep.subr.mxu0 0.0
    %972 = vmatpush1.msra.mxu0 0.0
    %973 = vmatprep.subr.mxu0 0.0
    %974 = vmatpush1.msra.mxu0 0.0
    %975 = vmatprep.subr.mxu0 0.0
    %976 = vmatpush1.msra.mxu0 0.0
    %977 = vmatprep.subr.mxu0 0.0
    %978 = vmatpush1.msra.mxu0 0.0
    %979 = vmatprep.subr.mxu0 0.0
    %980 = vmatpush1.msra.mxu0 0.0
    %981 = vmatprep.subr.mxu0 0.0
    %982 = vmatpush1.msra.mxu0 0.0
    %983 = vmatprep.subr.mxu0 0.0
    %984 = vmatpush1.msra.mxu0 0.0
    %985 = vmatprep.subr.mxu0 0.0
    %986 = vmatpush1.msra.mxu0 0.0
    %987 = vmatprep.subr.mxu0 0.0
    %988 = vmatpush1.msra.mxu0 0.0
    %989 = vmatprep.subr.mxu0 0.0
    %990 = vmatpush1.msra.mxu0 0.0
    %991 = vmatprep.subr.mxu0 0.0
    %992 = vmatpush1.msra.mxu0 0.0
    %993 = vmatprep.subr.mxu0 0.0
    %994 = vmatpush1.msra.mxu0 0.0
    %995 = vmatprep.subr.mxu0 0.0
    %996 = vmatpush1.msra.mxu0 0.0
    %997 = vmatprep.subr.mxu0 0.0
    %998 = vmatpush1.msra.mxu0 0.0
    %999 = vmatprep.subr.mxu0 0.0
    %1000 = vmatpush1.msra.mxu0 0.0
    %1001 = vmatprep.subr.mxu0 0.0
    %1002 = vmatpush1.msra.mxu0 0.0
    %1003 = vmatprep.subr.mxu0 0.0
    %1004 = vmatpush1.msra.mxu0 0.0
    %1005 = vmatprep.subr.mxu0 0.0
    %1006 = vmatpush1.msra.mxu0 0.0
    %1007 = vmatprep.subr.mxu0 0.0
    %1008 = vmatpush1.msra.mxu0 0.0
    %1009 = vmatprep.subr.mxu0 0.0
    %1010 = vmatpush1.msra.mxu0 0.0
    %1011 = vmatprep.subr.mxu0 0.0
    %1012 = vmatpush1.msra.mxu0 0.0
    %1013 = vmatprep.subr.mxu0 0.0
    %1014 = vmatpush1.msra.mxu0 0.0
    %1015 = vmatprep.subr.mxu0 0.0
    %1016 = vmatpush1.msra.mxu0 0.0
    %1017 = vmatprep.subr.mxu0 0.0
    %1018 = vmatpush1.msra.mxu0 0.0
    %1019 = vmatprep.subr.mxu0 0.0
    %1020 = vmatpush1.msra.mxu0 0.0
    %1021 = vmatprep.subr.mxu0 0.0
    %1022 = vmatpush1.msra.mxu0 0.0
    %1023 = vmatprep.subr.mxu0 0.0
    %1024 = vmatpush1.msra.mxu0 0.0
    %1025 = vmatprep.subr.mxu0 0.0
    %1026 = vmatpush1.msra.mxu0 0.0
    %1027 = vmatprep.subr.mxu0 0.0
    %1028 = vmatpush1.msra.mxu0 0.0
    %1029 = vmatprep.mubr.f32.mxu0 0.0
    %1030 = vmatmul.mubr.f32.gmra.mrb[0].mxu0 %v963
    %v1031 = vpop.f32.mrb[0].mxu0
    %v1032 = vadd.f32 0.0, %v1031
    %v1033 = vpop.f32.mrb[0].mxu0
    %1034 = vdwg.mxu0
    %v1036 = vsel %vm397, %v1032, 0
    %1038 = vmatprep.subr.mxu0 0.0
    %1039 = vmatpush1.msra.mxu0 %v148
    %1040 = vmatprep.subr.mxu0 0.0
    %1041 = vmatpush1.msra.mxu0 0.0
    %1042 = vmatprep.subr.mxu0 0.0
    %1043 = vmatpush1.msra.mxu0 0.0
    %1044 = vmatprep.subr.mxu0 0.0
    %1045 = vmatpush1.msra.mxu0 0.0
    %1046 = vmatprep.subr.mxu0 0.0
    %1047 = vmatpush1.msra.mxu0 0.0
    %1048 = vmatprep.subr.mxu0 0.0
    %1049 = vmatpush1.msra.mxu0 0.0
    %1050 = vmatprep.subr.mxu0 0.0
    %1051 = vmatpush1.msra.mxu0 0.0
    %1052 = vmatprep.subr.mxu0 0.0
    %1053 = vmatpush1.msra.mxu0 0.0
    %1054 = vmatprep.subr.mxu0 0.0
    %1055 = vmatpush1.msra.mxu0 0.0
    %1056 = vmatprep.subr.mxu0 0.0
    %1057 = vmatpush1.msra.mxu0 0.0
    %1058 = vmatprep.subr.mxu0 0.0
    %1059 = vmatpush1.msra.mxu0 0.0
    %1060 = vmatprep.subr.mxu0 0.0
    %1061 = vmatpush1.msra.mxu0 0.0
    %1062 = vmatprep.subr.mxu0 0.0
    %1063 = vmatpush1.msra.mxu0 0.0
    %1064 = vmatprep.subr.mxu0 0.0
    %1065 = vmatpush1.msra.mxu0 0.0
    %1066 = vmatprep.subr.mxu0 0.0
    %1067 = vmatpush1.msra.mxu0 0.0
    %1068 = vmatprep.subr.mxu0 0.0
    %1069 = vmatpush1.msra.mxu0 0.0
    %1070 = vmatprep.subr.mxu0 0.0
    %1071 = vmatpush1.msra.mxu0 0.0
    %1072 = vmatprep.subr.mxu0 0.0
    %1073 = vmatpush1.msra.mxu0 0.0
    %1074 = vmatprep.subr.mxu0 0.0
    %1075 = vmatpush1.msra.mxu0 0.0
    %1076 = vmatprep.subr.mxu0 0.0
    %1077 = vmatpush1.msra.mxu0 0.0
    %1078 = vmatprep.subr.mxu0 0.0
    %1079 = vmatpush1.msra.mxu0 0.0
    %1080 = vmatprep.subr.mxu0 0.0
    %1081 = vmatpush1.msra.mxu0 0.0
    %1082 = vmatprep.subr.mxu0 0.0
    %1083 = vmatpush1.msra.mxu0 0.0
    %1084 = vmatprep.subr.mxu0 0.0
    %1085 = vmatpush1.msra.mxu0 0.0
    %1086 = vmatprep.subr.mxu0 0.0
    %1087 = vmatpush1.msra.mxu0 0.0
    %1088 = vmatprep.subr.mxu0 0.0
    %1089 = vmatpush1.msra.mxu0 0.0
    %1090 = vmatprep.subr.mxu0 0.0
    %1091 = vmatpush1.msra.mxu0 0.0
    %1092 = vmatprep.subr.mxu0 0.0
    %1093 = vmatpush1.msra.mxu0 0.0
    %1094 = vmatprep.subr.mxu0 0.0
    %1095 = vmatpush1.msra.mxu0 0.0
    %1096 = vmatprep.subr.mxu0 0.0
    %1097 = vmatpush1.msra.mxu0 0.0
    %1098 = vmatprep.subr.mxu0 0.0
    %1099 = vmatpush1.msra.mxu0 0.0
    %1100 = vmatprep.subr.mxu0 0.0
    %1101 = vmatpush1.msra.mxu0 0.0
    %1102 = vmatprep.mubr.f32.mxu0 0.0
    %1103 = vmatmul.mubr.f32.gmra.mrb[0].mxu0 %v1036
    %v1104 = vpop.f32.mrb[0].mxu0
    %v1105 = vadd.f32 0.0, %v1104
    %v1106 = vpop.f32.mrb[0].mxu0
    %1107 = vdwg.mxu0
    %v1108 = vadd.f32 %v867, %v1105
    %1109 = vrot.lane.b32.xlu0 %v396, 104
    %v1110 = vpop.permute.xlu0 %1109
    %1111 = vrot.lane.b32.xlu0 %v307, 104
    %v1112 = vpop.permute.xlu0 %1111
    %v1113 = vsel %vm397, %v1110, 0
    %v1115 = vsel %vm397, %v1112, 0
    %1117 = vmatprep.subr.mxu0 0.0
    %1118 = vmatpush1.xpose.msra.mxu0 %v1115
    %1119 = vmatprep.subr.mxu0 0.0
    %1120 = vmatpush1.xpose.msra.mxu0 0.0
    %1121 = vmatprep.subr.mxu0 0.0
    %1122 = vmatpush1.xpose.msra.mxu0 0.0
    %1123 = vmatprep.subr.mxu0 0.0
    %1124 = vmatpush1.xpose.msra.mxu0 0.0
    %1125 = vmatprep.subr.mxu0 0.0
    %1126 = vmatpush1.xpose.msra.mxu0 0.0
    %1127 = vmatprep.subr.mxu0 0.0
    %1128 = vmatpush1.xpose.msra.mxu0 0.0
    %1129 = vmatprep.subr.mxu0 0.0
    %1130 = vmatpush1.xpose.msra.mxu0 0.0
    %1131 = vmatprep.subr.mxu0 0.0
    %1132 = vmatpush1.xpose.msra.mxu0 0.0
    %1133 = vmatprep.subr.mxu0 0.0
    %1134 = vmatpush1.xpose.msra.mxu0 0.0
    %1135 = vmatprep.subr.mxu0 0.0
    %1136 = vmatpush1.xpose.msra.mxu0 0.0
    %1137 = vmatprep.subr.mxu0 0.0
    %1138 = vmatpush1.xpose.msra.mxu0 0.0
    %1139 = vmatprep.subr.mxu0 0.0
    %1140 = vmatpush1.xpose.msra.mxu0 0.0
    %1141 = vmatprep.subr.mxu0 0.0
    %1142 = vmatpush1.xpose.msra.mxu0 0.0
    %1143 = vmatprep.subr.mxu0 0.0
    %1144 = vmatpush1.xpose.msra.mxu0 0.0
    %1145 = vmatprep.subr.mxu0 0.0
    %1146 = vmatpush1.xpose.msra.mxu0 0.0
    %1147 = vmatprep.subr.mxu0 0.0
    %1148 = vmatpush1.xpose.msra.mxu0 0.0
    %1149 = vmatprep.subr.mxu0 0.0
    %1150 = vmatpush1.xpose.msra.mxu0 0.0
    %1151 = vmatprep.subr.mxu0 0.0
    %1152 = vmatpush1.xpose.msra.mxu0 0.0
    %1153 = vmatprep.subr.mxu0 0.0
    %1154 = vmatpush1.xpose.msra.mxu0 0.0
    %1155 = vmatprep.subr.mxu0 0.0
    %1156 = vmatpush1.xpose.msra.mxu0 0.0
    %1157 = vmatprep.subr.mxu0 0.0
    %1158 = vmatpush1.xpose.msra.mxu0 0.0
    %1159 = vmatprep.subr.mxu0 0.0
    %1160 = vmatpush1.xpose.msra.mxu0 0.0
    %1161 = vmatprep.subr.mxu0 0.0
    %1162 = vmatpush1.xpose.msra.mxu0 0.0
    %1163 = vmatprep.subr.mxu0 0.0
    %1164 = vmatpush1.xpose.msra.mxu0 0.0
    %1165 = vmatprep.subr.mxu0 0.0
    %1166 = vmatpush1.xpose.msra.mxu0 0.0
    %1167 = vmatprep.subr.mxu0 0.0
    %1168 = vmatpush1.xpose.msra.mxu0 0.0
    %1169 = vmatprep.subr.mxu0 0.0
    %1170 = vmatpush1.xpose.msra.mxu0 0.0
    %1171 = vmatprep.subr.mxu0 0.0
    %1172 = vmatpush1.xpose.msra.mxu0 0.0
    %1173 = vmatprep.subr.mxu0 0.0
    %1174 = vmatpush1.xpose.msra.mxu0 0.0
    %1175 = vmatprep.subr.mxu0 0.0
    %1176 = vmatpush1.xpose.msra.mxu0 0.0
    %1177 = vmatprep.subr.mxu0 0.0
    %1178 = vmatpush1.xpose.msra.mxu0 0.0
    %1179 = vmatprep.subr.mxu0 0.0
    %1180 = vmatpush1.xpose.msra.mxu0 0.0
    %1181 = vmatprep.mubr.f32.mxu0 0.0
    %1182 = vmatmul.mubr.f32.gmra.mrb[0].mxu0 %v1113
    %v1183 = vpop.f32.mrb[0].mxu0
    %v1184 = vadd.f32 0.0, %v1183
    %v1185 = vpop.f32.mrb[0].mxu0
    %1186 = vdwg.mxu0
    %v1187 = vsel %vm397, %v1184, -inf
    %1188 = vmax.xlane.f32.xlu0 %v1187
    %v1189 = vpop.xlane.xlu0 %1188
    %v1190 = vsub.f32 %v1184, %v1189
    %v1191 = vmul.f32 %v1190, 1.442695
    %v1192 = vpow.pop %v1191
    %v1193 = vsel %vm397, %v1192, 0.0
    %1194 = vadd.xlane.f32.xlu0 %v1193
    %v1195 = vpop.xlane.xlu0 %1194
    %v1196 = vrcp.pop %v1195
    %v1197 = vmul.f32 %v1192, %v1196
    %1198 = vrot.lane.b32.xlu0 %v388, 104
    %v1199 = vpop.permute.xlu0 %1198
    %v1202 = vsel %vm397, %v1197, 0
    %1204 = vmatprep.subr.mxu0 0.0
    %1205 = vmatpush1.msra.mxu0 %v1199
    %1206 = vmatprep.subr.mxu0 0.0
    %1207 = vmatpush1.msra.mxu0 0.0
    %1208 = vmatprep.subr.mxu0 0.0
    %1209 = vmatpush1.msra.mxu0 0.0
    %1210 = vmatprep.subr.mxu0 0.0
    %1211 = vmatpush1.msra.mxu0 0.0
    %1212 = vmatprep.subr.mxu0 0.0
    %1213 = vmatpush1.msra.mxu0 0.0
    %1214 = vmatprep.subr.mxu0 0.0
    %1215 = vmatpush1.msra.mxu0 0.0
    %1216 = vmatprep.subr.mxu0 0.0
    %1217 = vmatpush1.msra.mxu0 0.0
    %1218 = vmatprep.subr.mxu0 0.0
    %1219 = vmatpush1.msra.mxu0 0.0
    %1220 = vmatprep.subr.mxu0 0.0
    %1221 = vmatpush1.msra.mxu0 0.0
    %1222 = vmatprep.subr.mxu0 0.0
    %1223 = vmatpush1.msra.mxu0 0.0
    %1224 = vmatprep.subr.mxu0 0.0
    %1225 = vmatpush1.msra.mxu0 0.0
    %1226 = vmatprep.subr.mxu0 0.0
    %1227 = vmatpush1.msra.mxu0 0.0
    %1228 = vmatprep.subr.mxu0 0.0
    %1229 = vmatpush1.msra.mxu0 0.0
    %1230 = vmatprep.subr.mxu0 0.0
    %1231 = vmatpush1.msra.mxu0 0.0
    %1232 = vmatprep.subr.mxu0 0.0
    %1233 = vmatpush1.msra.mxu0 0.0
    %1234 = vmatprep.subr.mxu0 0.0
    %1235 = vmatpush1.msra.mxu0 0.0
    %1236 = vmatprep.subr.mxu0 0.0
    %1237 = vmatpush1.msra.mxu0 0.0
    %1238 = vmatprep.subr.mxu0 0.0
    %1239 = vmatpush1.msra.mxu0 0.0
    %1240 = vmatprep.subr.mxu0 0.0
    %1241 = vmatpush1.msra.mxu0 0.0
    %1242 = vmatprep.subr.mxu0 0.0
    %1243 = vmatpush1.msra.mxu0 0.0
    %1244 = vmatprep.subr.mxu0 0.0
    %1245 = vmatpush1.msra.mxu0 0.0
    %1246 = vmatprep.subr.mxu0 0.0
    %1247 = vmatpush1.msra.mxu0 0.0
    %1248 = vmatprep.subr.mxu0 0.0
    %1249 = vmatpush1.msra.mxu0 0.0
    %1250 = vmatprep.subr.mxu0 0.0
    %1251 = vmatpush1.msra.mxu0 0.0
    %1252 = vmatprep.subr.mxu0 0.0
    %1253 = vmatpush1.msra.mxu0 0.0
    %1254 = vmatprep.subr.mxu0 0.0
    %1255 = vmatpush1.msra.mxu0 0.0
    %1256 = vmatprep.subr.mxu0 0.0
    %1257 = vmatpush1.msra.mxu0 0.0
    %1258 = vmatprep.subr.mxu0 0.0
    %1259 = vmatpush1.msra.mxu0 0.0
    %1260 = vmatprep.subr.mxu0 0.0
    %1261 = vmatpush1.msra.mxu0 0.0
    %1262 = vmatprep.subr.mxu0 0.0
    %1263 = vmatpush1.msra.mxu0 0.0
    %1264 = vmatprep.subr.mxu0 0.0
    %1265 = vmatpush1.msra.mxu0 0.0
    %1266 = vmatprep.subr.mxu0 0.0
    %1267 = vmatpush1.msra.mxu0 0.0
    %1268 = vmatprep.mubr.f32.mxu0 0.0
    %1269 = vmatmul.mubr.f32.gmra.mrb[0].mxu0 %v1202
    %v1270 = vpop.f32.mrb[0].mxu0
    %v1271 = vadd.f32 0.0, %v1270
    %v1272 = vpop.f32.mrb[0].mxu0
    %1273 = vdwg.mxu0
    %v1275 = vsel %vm397, %v1271, 0
    %1277 = vmatprep.subr.mxu0 0.0
    %1278 = vmatpush1.msra.mxu0 %v149
    %1279 = vmatprep.subr.mxu0 0.0
    %1280 = vmatpush1.msra.mxu0 0.0
    %1281 = vmatprep.subr.mxu0 0.0
    %1282 = vmatpush1.msra.mxu0 0.0
    %1283 = vmatprep.subr.mxu0 0.0
    %1284 = vmatpush1.msra.mxu0 0.0
    %1285 = vmatprep.subr.mxu0 0.0
    %1286 = vmatpush1.msra.mxu0 0.0
    %1287 = vmatprep.subr.mxu0 0.0
    %1288 = vmatpush1.msra.mxu0 0.0
    %1289 = vmatprep.subr.mxu0 0.0
    %1290 = vmatpush1.msra.mxu0 0.0
    %1291 = vmatprep.subr.mxu0 0.0
    %1292 = vmatpush1.msra.mxu0 0.0
    %1293 = vmatprep.subr.mxu0 0.0
    %1294 = vmatpush1.msra.mxu0 0.0
    %1295 = vmatprep.subr.mxu0 0.0
    %1296 = vmatpush1.msra.mxu0 0.0
    %1297 = vmatprep.subr.mxu0 0.0
    %1298 = vmatpush1.msra.mxu0 0.0
    %1299 = vmatprep.subr.mxu0 0.0
    %1300 = vmatpush1.msra.mxu0 0.0
    %1301 = vmatprep.subr.mxu0 0.0
    %1302 = vmatpush1.msra.mxu0 0.0
    %1303 = vmatprep.subr.mxu0 0.0
    %1304 = vmatpush1.msra.mxu0 0.0
    %1305 = vmatprep.subr.mxu0 0.0
    %1306 = vmatpush1.msra.mxu0 0.0
    %1307 = vmatprep.subr.mxu0 0.0
    %1308 = vmatpush1.msra.mxu0 0.0
    %1309 = vmatprep.subr.mxu0 0.0
    %1310 = vmatpush1.msra.mxu0 0.0
    %1311 = vmatprep.subr.mxu0 0.0
    %1312 = vmatpush1.msra.mxu0 0.0
    %1313 = vmatprep.subr.mxu0 0.0
    %1314 = vmatpush1.msra.mxu0 0.0
    %1315 = vmatprep.subr.mxu0 0.0
    %1316 = vmatpush1.msra.mxu0 0.0
    %1317 = vmatprep.subr.mxu0 0.0
    %1318 = vmatpush1.msra.mxu0 0.0
    %1319 = vmatprep.subr.mxu0 0.0
    %1320 = vmatpush1.msra.mxu0 0.0
    %1321 = vmatprep.subr.mxu0 0.0
    %1322 = vmatpush1.msra.mxu0 0.0
    %1323 = vmatprep.subr.mxu0 0.0
    %1324 = vmatpush1.msra.mxu0 0.0
    %1325 = vmatprep.subr.mxu0 0.0
    %1326 = vmatpush1.msra.mxu0 0.0
    %1327 = vmatprep.subr.mxu0 0.0
    %1328 = vmatpush1.msra.mxu0 0.0
    %1329 = vmatprep.subr.mxu0 0.0
    %1330 = vmatpush1.msra.mxu0 0.0
    %1331 = vmatprep.subr.mxu0 0.0
    %1332 = vmatpush1.msra.mxu0 0.0
    %1333 = vmatprep.subr.mxu0 0.0
    %1334 = vmatpush1.msra.mxu0 0.0
    %1335 = vmatprep.subr.mxu0 0.0
    %1336 = vmatpush1.msra.mxu0 0.0
    %1337 = vmatprep.subr.mxu0 0.0
    %1338 = vmatpush1.msra.mxu0 0.0
    %1339 = vmatprep.subr.mxu0 0.0
    %1340 = vmatpush1.msra.mxu0 0.0
    %1341 = vmatprep.mubr.f32.mxu0 0.0
    %1342 = vmatmul.mubr.f32.gmra.mrb[0].mxu0 %v1275
    %v1343 = vpop.f32.mrb[0].mxu0
    %v1344 = vadd.f32 0.0, %v1343
    %v1345 = vpop.f32.mrb[0].mxu0
    %1346 = vdwg.mxu0
    %v1347 = vadd.f32 %v1108, %v1344
    %v1348 = vadd.f32 %v1347, %v128
    %v1349 = vsel %vm152, %v1348, 0.0
    %1350 = vadd.xlane.f32.xlu0 %v1349
    %v1351 = vpop.xlane.xlu0 %1350
    %v1352 = vrcp.pop 32.0
    %v1353 = vmul.f32 %v1351, %v1352
    %v1354 = vsub.f32 %v1348, %v1353
    %v1355 = vmul.f32 %v1354, %v1354
    %v1356 = vsel %vm152, %v1355, 0.0
    %1357 = vadd.xlane.f32.xlu0 %v1356
    %v1358 = vpop.xlane.xlu0 %1357
    %v1359 = vmul.f32 %v1358, %v1352
    %v1360 = vadd.f32 %v1359, 1e-06
    %v1361 = vrsqrt.pop %v1360
    %v1362 = vmul.f32 %v1354, %v1361
    %v1364 = vlaneseq
    %v1365 = vshrl.u32 %v1364, 7
    %v1366 = vsub.s32 0, %v1365
    %v1367 = vrot.slane %v150, %v1366
    %v1369 = vmul.f32 %v1362, %v1367
    %v1371 = vlaneseq
    %v1372 = vshrl.u32 %v1371, 7
    %v1373 = vsub.s32 0, %v1372
    %v1374 = vrot.slane %v151, %v1373
    %v1376 = vadd.f32 %v1369, %v1374
    %1377 = vst.msk [vmem:[#allocation14] sm:$0xff] %vm152, %v1376
    %v1378 = vmul.f32 %v231, 0.35355338
    %v1380 = vsel %vm397, %v1378, 0
    %v1383 = vsel %vm397, %v312, 0
    %1385 = vmatprep.subr.mxu0 0.0
    %1386 = vmatpush1.xpose.msra.mxu0 %v1383
    %1387 = vmatprep.subr.mxu0 0.0
    %1388 = vmatpush1.xpose.msra.mxu0 0.0
    %1389 = vmatprep.subr.mxu0 0.0
    %1390 = vmatpush1.xpose.msra.mxu0 0.0
    %1391 = vmatprep.subr.mxu0 0.0
    %1392 = vmatpush1.xpose.msra.mxu0 0.0
    %1393 = vmatprep.subr.mxu0 0.0
    %1394 = vmatpush1.xpose.msra.mxu0 0.0
    %1395 = vmatprep.subr.mxu0 0.0
    %1396 = vmatpush1.xpose.msra.mxu0 0.0
    %1397 = vmatprep.subr.mxu0 0.0
    %1398 = vmatpush1.xpose.msra.mxu0 0.0
    %1399 = vmatprep.subr.mxu0 0.0
    %1400 = vmatpush1.xpose.msra.mxu0 0.0
    %1401 = vmatprep.subr.mxu0 0.0
    %1402 = vmatpush1.xpose.msra.mxu0 0.0
    %1403 = vmatprep.subr.mxu0 0.0
    %1404 = vmatpush1.xpose.msra.mxu0 0.0
    %1405 = vmatprep.subr.mxu0 0.0
    %1406 = vmatpush1.xpose.msra.mxu0 0.0
    %1407 = vmatprep.subr.mxu0 0.0
    %1408 = vmatpush1.xpose.msra.mxu0 0.0
    %1409 = vmatprep.subr.mxu0 0.0
    %1410 = vmatpush1.xpose.msra.mxu0 0.0
    %1411 = vmatprep.subr.mxu0 0.0
    %1412 = vmatpush1.xpose.msra.mxu0 0.0
    %1413 = vmatprep.subr.mxu0 0.0
    %1414 = vmatpush1.xpose.msra.mxu0 0.0
    %1415 = vmatprep.subr.mxu0 0.0
    %1416 = vmatpush1.xpose.msra.mxu0 0.0
    %1417 = vmatprep.subr.mxu0 0.0
    %1418 = vmatpush1.xpose.msra.mxu0 0.0
    %1419 = vmatprep.subr.mxu0 0.0
    %1420 = vmatpush1.xpose.msra.mxu0 0.0
    %1421 = vmatprep.subr.mxu0 0.0
    %1422 = vmatpush1.xpose.msra.mxu0 0.0
    %1423 = vmatprep.subr.mxu0 0.0
    %1424 = vmatpush1.xpose.msra.mxu0 0.0
    %1425 = vmatprep.subr.mxu0 0.0
    %1426 = vmatpush1.xpose.msra.mxu0 0.0
    %1427 = vmatprep.subr.mxu0 0.0
    %1428 = vmatpush1.xpose.msra.mxu0 0.0
    %1429 = vmatprep.subr.mxu0 0.0
    %1430 = vmatpush1.xpose.msra.mxu0 0.0
    %1431 = vmatprep.subr.mxu0 0.0
    %1432 = vmatpush1.xpose.msra.mxu0 0.0
    %1433 = vmatprep.subr.mxu0 0.0
    %1434 = vmatpush1.xpose.msra.mxu0 0.0
    %1435 = vmatprep.subr.mxu0 0.0
    %1436 = vmatpush1.xpose.msra.mxu0 0.0
    %1437 = vmatprep.subr.mxu0 0.0
    %1438 = vmatpush1.xpose.msra.mxu0 0.0
    %1439 = vmatprep.subr.mxu0 0.0
    %1440 = vmatpush1.xpose.msra.mxu0 0.0
    %1441 = vmatprep.subr.mxu0 0.0
    %1442 = vmatpush1.xpose.msra.mxu0 0.0
    %1443 = vmatprep.subr.mxu0 0.0
    %1444 = vmatpush1.xpose.msra.mxu0 0.0
    %1445 = vmatprep.subr.mxu0 0.0
    %1446 = vmatpush1.xpose.msra.mxu0 0.0
    %1447 = vmatprep.subr.mxu0 0.0
    %1448 = vmatpush1.xpose.msra.mxu0 0.0
    %1449 = vmatprep.mubr.f32.mxu0 0.0
    %1450 = vmatmul.mubr.f32.gmra.mrb[0].mxu0 %v1380
    %v1451 = vpop.f32.mrb[0].mxu0
    %v1452 = vadd.f32 0.0, %v1451
    %v1453 = vpop.f32.mrb[0].mxu0
    %1454 = vdwg.mxu0
    %v1455 = vsel %vm397, %v1452, -inf
    %1456 = vmax.xlane.f32.xlu0 %v1455
    %v1457 = vpop.xlane.xlu0 %1456
    %v1458 = vsub.f32 %v1452, %v1457
    %v1459 = vmul.f32 %v1458, 1.442695
    %v1460 = vpow.pop %v1459
    %v1461 = vsel %vm397, %v1460, 0.0
    %1462 = vadd.xlane.f32.xlu0 %v1461
    %v1463 = vpop.xlane.xlu0 %1462
    %v1464 = vrcp.pop %v1463
    %v1465 = vmul.f32 %v1460, %v1464
    %v1467 = vsel %vm397, %v1465, 0
    %1469 = vmatprep.subr.mxu0 0.0
    %1470 = vmatpush1.msra.mxu0 %v393
    %1471 = vmatprep.subr.mxu0 0.0
    %1472 = vmatpush1.msra.mxu0 0.0
    %1473 = vmatprep.subr.mxu0 0.0
    %1474 = vmatpush1.msra.mxu0 0.0
    %1475 = vmatprep.subr.mxu0 0.0
    %1476 = vmatpush1.msra.mxu0 0.0
    %1477 = vmatprep.subr.mxu0 0.0
    %1478 = vmatpush1.msra.mxu0 0.0
    %1479 = vmatprep.subr.mxu0 0.0
    %1480 = vmatpush1.msra.mxu0 0.0
    %1481 = vmatprep.subr.mxu0 0.0
    %1482 = vmatpush1.msra.mxu0 0.0
    %1483 = vmatprep.subr.mxu0 0.0
    %1484 = vmatpush1.msra.mxu0 0.0
    %1485 = vmatprep.subr.mxu0 0.0
    %1486 = vmatpush1.msra.mxu0 0.0
    %1487 = vmatprep.subr.mxu0 0.0
    %1488 = vmatpush1.msra.mxu0 0.0
    %1489 = vmatprep.subr.mxu0 0.0
    %1490 = vmatpush1.msra.mxu0 0.0
    %1491 = vmatprep.subr.mxu0 0.0
    %1492 = vmatpush1.msra.mxu0 0.0
    %1493 = vmatprep.subr.mxu0 0.0
    %1494 = vmatpush1.msra.mxu0 0.0
    %1495 = vmatprep.subr.mxu0 0.0
    %1496 = vmatpush1.msra.mxu0 0.0
    %1497 = vmatprep.subr.mxu0 0.0
    %1498 = vmatpush1.msra.mxu0 0.0
    %1499 = vmatprep.subr.mxu0 0.0
    %1500 = vmatpush1.msra.mxu0 0.0
    %1501 = vmatprep.subr.mxu0 0.0
    %1502 = vmatpush1.msra.mxu0 0.0
    %1503 = vmatprep.subr.mxu0 0.0
    %1504 = vmatpush1.msra.mxu0 0.0
    %1505 = vmatprep.subr.mxu0 0.0
    %1506 = vmatpush1.msra.mxu0 0.0
    %1507 = vmatprep.subr.mxu0 0.0
    %1508 = vmatpush1.msra.mxu0 0.0
    %1509 = vmatprep.subr.mxu0 0.0
    %1510 = vmatpush1.msra.mxu0 0.0
    %1511 = vmatprep.subr.mxu0 0.0
    %1512 = vmatpush1.msra.mxu0 0.0
    %1513 = vmatprep.subr.mxu0 0.0
    %1514 = vmatpush1.msra.mxu0 0.0
    %1515 = vmatprep.subr.mxu0 0.0
    %1516 = vmatpush1.msra.mxu0 0.0
    %1517 = vmatprep.subr.mxu0 0.0
    %1518 = vmatpush1.msra.mxu0 0.0
    %1519 = vmatprep.subr.mxu0 0.0
    %1520 = vmatpush1.msra.mxu0 0.0
    %1521 = vmatprep.subr.mxu0 0.0
    %1522 = vmatpush1.msra.mxu0 0.0
    %1523 = vmatprep.subr.mxu0 0.0
    %1524 = vmatpush1.msra.mxu0 0.0
    %1525 = vmatprep.subr.mxu0 0.0
    %1526 = vmatpush1.msra.mxu0 0.0
    %1527 = vmatprep.subr.mxu0 0.0
    %1528 = vmatpush1.msra.mxu0 0.0
    %1529 = vmatprep.subr.mxu0 0.0
    %1530 = vmatpush1.msra.mxu0 0.0
    %1531 = vmatprep.subr.mxu0 0.0
    %1532 = vmatpush1.msra.mxu0 0.0
    %1533 = vmatprep.mubr.f32.mxu0 0.0
    %1534 = vmatmul.mubr.f32.gmra.mrb[0].mxu0 %v1467
    %v1535 = vpop.f32.mrb[0].mxu0
    %v1536 = vadd.f32 0.0, %v1535
    %v1537 = vpop.f32.mrb[0].mxu0
    %1538 = vdwg.mxu0
    %1539 = vrot.lane.b32.xlu0 %v1378, 120
    %v1540 = vpop.permute.xlu0 %1539
    %1541 = vrot.lane.b32.xlu0 %v312, 120
    %v1542 = vpop.permute.xlu0 %1541
    %v1543 = vsel %vm397, %v1540, 0
    %v1545 = vsel %vm397, %v1542, 0
    %1547 = vmatprep.subr.mxu0 0.0
    %1548 = vmatpush1.xpose.msra.mxu0 %v1545
    %1549 = vmatprep.subr.mxu0 0.0
    %1550 = vmatpush1.xpose.msra.mxu0 0.0
    %1551 = vmatprep.subr.mxu0 0.0
    %1552 = vmatpush1.xpose.msra.mxu0 0.0
    %1553 = vmatprep.subr.mxu0 0.0
    %1554 = vmatpush1.xpose.msra.mxu0 0.0
    %1555 = vmatprep.subr.mxu0 0.0
    %1556 = vmatpush1.xpose.msra.mxu0 0.0
    %1557 = vmatprep.subr.mxu0 0.0
    %1558 = vmatpush1.xpose.msra.mxu0 0.0
    %1559 = vmatprep.subr.mxu0 0.0
    %1560 = vmatpush1.xpose.msra.mxu0 0.0
    %1561 = vmatprep.subr.mxu0 0.0
    %1562 = vmatpush1.xpose.msra.mxu0 0.0
    %1563 = vmatprep.subr.mxu0 0.0
    %1564 = vmatpush1.xpose.msra.mxu0 0.0
    %1565 = vmatprep.subr.mxu0 0.0
    %1566 = vmatpush1.xpose.msra.mxu0 0.0
    %1567 = vmatprep.subr.mxu0 0.0
    %1568 = vmatpush1.xpose.msra.mxu0 0.0
    %1569 = vmatprep.subr.mxu0 0.0
    %1570 = vmatpush1.xpose.msra.mxu0 0.0
    %1571 = vmatprep.subr.mxu0 0.0
    %1572 = vmatpush1.xpose.msra.mxu0 0.0
    %1573 = vmatprep.subr.mxu0 0.0
    %1574 = vmatpush1.xpose.msra.mxu0 0.0
    %1575 = vmatprep.subr.mxu0 0.0
    %1576 = vmatpush1.xpose.msra.mxu0 0.0
    %1577 = vmatprep.subr.mxu0 0.0
    %1578 = vmatpush1.xpose.msra.mxu0 0.0
    %1579 = vmatprep.subr.mxu0 0.0
    %1580 = vmatpush1.xpose.msra.mxu0 0.0
    %1581 = vmatprep.subr.mxu0 0.0
    %1582 = vmatpush1.xpose.msra.mxu0 0.0
    %1583 = vmatprep.subr.mxu0 0.0
    %1584 = vmatpush1.xpose.msra.mxu0 0.0
    %1585 = vmatprep.subr.mxu0 0.0
    %1586 = vmatpush1.xpose.msra.mxu0 0.0
    %1587 = vmatprep.subr.mxu0 0.0
    %1588 = vmatpush1.xpose.msra.mxu0 0.0
    %1589 = vmatprep.subr.mxu0 0.0
    %1590 = vmatpush1.xpose.msra.mxu0 0.0
    %1591 = vmatprep.subr.mxu0 0.0
    %1592 = vmatpush1.xpose.msra.mxu0 0.0
    %1593 = vmatprep.subr.mxu0 0.0
    %1594 = vmatpush1.xpose.msra.mxu0 0.0
    %1595 = vmatprep.subr.mxu0 0.0
    %1596 = vmatpush1.xpose.msra.mxu0 0.0
    %1597 = vmatprep.subr.mxu0 0.0
    %1598 = vmatpush1.xpose.msra.mxu0 0.0
    %1599 = vmatprep.subr.mxu0 0.0
    %1600 = vmatpush1.xpose.msra.mxu0 0.0
    %1601 = vmatprep.subr.mxu0 0.0
    %1602 = vmatpush1.xpose.msra.mxu0 0.0
    %1603 = vmatprep.subr.mxu0 0.0
    %1604 = vmatpush1.xpose.msra.mxu0 0.0
    %1605 = vmatprep.subr.mxu0 0.0
    %1606 = vmatpush1.xpose.msra.mxu0 0.0
    %1607 = vmatprep.subr.mxu0 0.0
    %1608 = vmatpush1.xpose.msra.mxu0 0.0
    %1609 = vmatprep.subr.mxu0 0.0
    %1610 = vmatpush1.xpose.msra.mxu0 0.0
    %1611 = vmatprep.mubr.f32.mxu0 0.0
    %1612 = vmatmul.mubr.f32.gmra.mrb[0].mxu0 %v1543
    %v1613 = vpop.f32.mrb[0].mxu0
    %v1614 = vadd.f32 0.0, %v1613
    %v1615 = vpop.f32.mrb[0].mxu0
    %1616 = vdwg.mxu0
    %v1617 = vsel %vm397, %v1614, -inf
    %1618 = vmax.xlane.f32.xlu0 %v1617
    %v1619 = vpop.xlane.xlu0 %1618
    %v1620 = vsub.f32 %v1614, %v1619
    %v1621 = vmul.f32 %v1620, 1.442695
    %v1622 = vpow.pop %v1621
    %v1623 = vsel %vm397, %v1622, 0.0
    %1624 = vadd.xlane.f32.xlu0 %v1623
    %v1625 = vpop.xlane.xlu0 %1624
    %v1626 = vrcp.pop %v1625
    %v1627 = vmul.f32 %v1622, %v1626
    %1629 = vrot.lane.b32.xlu0 %v393, 120
    %v1630 = vpop.permute.xlu0 %1629
    %v1633 = vsel %vm397, %v1627, 0
    %1635 = vmatprep.subr.mxu0 0.0
    %1636 = vmatpush1.msra.mxu0 %v1630
    %1637 = vmatprep.subr.mxu0 0.0
    %1638 = vmatpush1.msra.mxu0 0.0
    %1639 = vmatprep.subr.mxu0 0.0
    %1640 = vmatpush1.msra.mxu0 0.0
    %1641 = vmatprep.subr.mxu0 0.0
    %1642 = vmatpush1.msra.mxu0 0.0
    %1643 = vmatprep.subr.mxu0 0.0
    %1644 = vmatpush1.msra.mxu0 0.0
    %1645 = vmatprep.subr.mxu0 0.0
    %1646 = vmatpush1.msra.mxu0 0.0
    %1647 = vmatprep.subr.mxu0 0.0
    %1648 = vmatpush1.msra.mxu0 0.0
    %1649 = vmatprep.subr.mxu0 0.0
    %1650 = vmatpush1.msra.mxu0 0.0
    %1651 = vmatprep.subr.mxu0 0.0
    %1652 = vmatpush1.msra.mxu0 0.0
    %1653 = vmatprep.subr.mxu0 0.0
    %1654 = vmatpush1.msra.mxu0 0.0
    %1655 = vmatprep.subr.mxu0 0.0
    %1656 = vmatpush1.msra.mxu0 0.0
    %1657 = vmatprep.subr.mxu0 0.0
    %1658 = vmatpush1.msra.mxu0 0.0
    %1659 = vmatprep.subr.mxu0 0.0
    %1660 = vmatpush1.msra.mxu0 0.0
    %1661 = vmatprep.subr.mxu0 0.0
    %1662 = vmatpush1.msra.mxu0 0.0
    %1663 = vmatprep.subr.mxu0 0.0
    %1664 = vmatpush1.msra.mxu0 0.0
    %1665 = vmatprep.subr.mxu0 0.0
    %1666 = vmatpush1.msra.mxu0 0.0
    %1667 = vmatprep.subr.mxu0 0.0
    %1668 = vmatpush1.msra.mxu0 0.0
    %1669 = vmatprep.subr.mxu0 0.0
    %1670 = vmatpush1.msra.mxu0 0.0
    %1671 = vmatprep.subr.mxu0 0.0
    %1672 = vmatpush1.msra.mxu0 0.0
    %1673 = vmatprep.subr.mxu0 0.0
    %1674 = vmatpush1.msra.mxu0 0.0
    %1675 = vmatprep.subr.mxu0 0.0
    %1676 = vmatpush1.msra.mxu0 0.0
    %1677 = vmatprep.subr.mxu0 0.0
    %1678 = vmatpush1.msra.mxu0 0.0
    %1679 = vmatprep.subr.mxu0 0.0
    %1680 = vmatpush1.msra.mxu0 0.0
    %1681 = vmatprep.subr.mxu0 0.0
    %1682 = vmatpush1.msra.mxu0 0.0
    %1683 = vmatprep.subr.mxu0 0.0
    %1684 = vmatpush1.msra.mxu0 0.0
    %1685 = vmatprep.subr.mxu0 0.0
    %1686 = vmatpush1.msra.mxu0 0.0
    %1687 = vmatprep.subr.mxu0 0.0
    %1688 = vmatpush1.msra.mxu0 0.0
    %1689 = vmatprep.subr.mxu0 0.0
    %1690 = vmatpush1.msra.mxu0 0.0
    %1691 = vmatprep.subr.mxu0 0.0
    %1692 = vmatpush1.msra.mxu0 0.0
    %1693 = vmatprep.subr.mxu0 0.0
    %1694 = vmatpush1.msra.mxu0 0.0
    %1695 = vmatprep.subr.mxu0 0.0
    %1696 = vmatpush1.msra.mxu0 0.0
    %1697 = vmatprep.subr.mxu0 0.0
    %1698 = vmatpush1.msra.mxu0 0.0
    %1699 = vmatprep.mubr.f32.mxu0 0.0
    %1700 = vmatmul.mubr.f32.gmra.mrb[0].mxu0 %v1633
    %v1701 = vpop.f32.mrb[0].mxu0
    %v1702 = vadd.f32 0.0, %v1701
    %v1703 = vpop.f32.mrb[0].mxu0
    %1704 = vdwg.mxu0
    %v1706 = vsel %vm397, %v1702, 0
    %1708 = vmatprep.subr.mxu0 0.0
    %1709 = vmatpush1.msra.mxu0 %v147
    %1710 = vmatprep.subr.mxu0 0.0
    %1711 = vmatpush1.msra.mxu0 0.0
    %1712 = vmatprep.subr.mxu0 0.0
    %1713 = vmatpush1.msra.mxu0 0.0
    %1714 = vmatprep.subr.mxu0 0.0
    %1715 = vmatpush1.msra.mxu0 0.0
    %1716 = vmatprep.subr.mxu0 0.0
    %1717 = vmatpush1.msra.mxu0 0.0
    %1718 = vmatprep.subr.mxu0 0.0
    %1719 = vmatpush1.msra.mxu0 0.0
    %1720 = vmatprep.subr.mxu0 0.0
    %1721 = vmatpush1.msra.mxu0 0.0
    %1722 = vmatprep.subr.mxu0 0.0
    %1723 = vmatpush1.msra.mxu0 0.0
    %1724 = vmatprep.subr.mxu0 0.0
    %1725 = vmatpush1.msra.mxu0 0.0
    %1726 = vmatprep.subr.mxu0 0.0
    %1727 = vmatpush1.msra.mxu0 0.0
    %1728 = vmatprep.subr.mxu0 0.0
    %1729 = vmatpush1.msra.mxu0 0.0
    %1730 = vmatprep.subr.mxu0 0.0
    %1731 = vmatpush1.msra.mxu0 0.0
    %1732 = vmatprep.subr.mxu0 0.0
    %1733 = vmatpush1.msra.mxu0 0.0
    %1734 = vmatprep.subr.mxu0 0.0
    %1735 = vmatpush1.msra.mxu0 0.0
    %1736 = vmatprep.subr.mxu0 0.0
    %1737 = vmatpush1.msra.mxu0 0.0
    %1738 = vmatprep.subr.mxu0 0.0
    %1739 = vmatpush1.msra.mxu0 0.0
    %1740 = vmatprep.subr.mxu0 0.0
    %1741 = vmatpush1.msra.mxu0 0.0
    %1742 = vmatprep.subr.mxu0 0.0
    %1743 = vmatpush1.msra.mxu0 0.0
    %1744 = vmatprep.subr.mxu0 0.0
    %1745 = vmatpush1.msra.mxu0 0.0
    %1746 = vmatprep.subr.mxu0 0.0
    %1747 = vmatpush1.msra.mxu0 0.0
    %1748 = vmatprep.subr.mxu0 0.0
    %1749 = vmatpush1.msra.mxu0 0.0
    %1750 = vmatprep.subr.mxu0 0.0
    %1751 = vmatpush1.msra.mxu0 0.0
    %1752 = vmatprep.subr.mxu0 0.0
    %1753 = vmatpush1.msra.mxu0 0.0
    %1754 = vmatprep.subr.mxu0 0.0
    %1755 = vmatpush1.msra.mxu0 0.0
    %1756 = vmatprep.subr.mxu0 0.0
    %1757 = vmatpush1.msra.mxu0 0.0
    %1758 = vmatprep.subr.mxu0 0.0
    %1759 = vmatpush1.msra.mxu0 0.0
    %1760 = vmatprep.subr.mxu0 0.0
    %1761 = vmatpush1.msra.mxu0 0.0
    %1762 = vmatprep.subr.mxu0 0.0
    %1763 = vmatpush1.msra.mxu0 0.0
    %1764 = vmatprep.subr.mxu0 0.0
    %1765 = vmatpush1.msra.mxu0 0.0
    %1766 = vmatprep.subr.mxu0 0.0
    %1767 = vmatpush1.msra.mxu0 0.0
    %1768 = vmatprep.subr.mxu0 0.0
    %1769 = vmatpush1.msra.mxu0 0.0
    %1770 = vmatprep.subr.mxu0 0.0
    %1771 = vmatpush1.msra.mxu0 0.0
    %1772 = vmatprep.mubr.f32.mxu0 0.0
    %1773 = vmatmul.mubr.f32.gmra.mrb[0].mxu0 %v1706
    %v1774 = vpop.f32.mrb[0].mxu0
    %v1775 = vadd.f32 0.0, %v1774
    %v1776 = vpop.f32.mrb[0].mxu0
    %1777 = vdwg.mxu0
    %v1779 = vsel %vm397, %v1536, 0
    %1781 = vmatprep.subr.mxu0 0.0
    %1782 = vmatpush1.msra.mxu0 %v146
    %1783 = vmatprep.subr.mxu0 0.0
    %1784 = vmatpush1.msra.mxu0 0.0
    %1785 = vmatprep.subr.mxu0 0.0
    %1786 = vmatpush1.msra.mxu0 0.0
    %1787 = vmatprep.subr.mxu0 0.0
    %1788 = vmatpush1.msra.mxu0 0.0
    %1789 = vmatprep.subr.mxu0 0.0
    %1790 = vmatpush1.msra.mxu0 0.0
    %1791 = vmatprep.subr.mxu0 0.0
    %1792 = vmatpush1.msra.mxu0 0.0
    %1793 = vmatprep.subr.mxu0 0.0
    %1794 = vmatpush1.msra.mxu0 0.0
    %1795 = vmatprep.subr.mxu0 0.0
    %1796 = vmatpush1.msra.mxu0 0.0
    %1797 = vmatprep.subr.mxu0 0.0
    %1798 = vmatpush1.msra.mxu0 0.0
    %1799 = vmatprep.subr.mxu0 0.0
    %1800 = vmatpush1.msra.mxu0 0.0
    %1801 = vmatprep.subr.mxu0 0.0
    %1802 = vmatpush1.msra.mxu0 0.0
    %1803 = vmatprep.subr.mxu0 0.0
    %1804 = vmatpush1.msra.mxu0 0.0
    %1805 = vmatprep.subr.mxu0 0.0
    %1806 = vmatpush1.msra.mxu0 0.0
    %1807 = vmatprep.subr.mxu0 0.0
    %1808 = vmatpush1.msra.mxu0 0.0
    %1809 = vmatprep.subr.mxu0 0.0
    %1810 = vmatpush1.msra.mxu0 0.0
    %1811 = vmatprep.subr.mxu0 0.0
    %1812 = vmatpush1.msra.mxu0 0.0
    %1813 = vmatprep.subr.mxu0 0.0
    %1814 = vmatpush1.msra.mxu0 0.0
    %1815 = vmatprep.subr.mxu0 0.0
    %1816 = vmatpush1.msra.mxu0 0.0
    %1817 = vmatprep.subr.mxu0 0.0
    %1818 = vmatpush1.msra.mxu0 0.0
    %1819 = vmatprep.subr.mxu0 0.0
    %1820 = vmatpush1.msra.mxu0 0.0
    %1821 = vmatprep.subr.mxu0 0.0
    %1822 = vmatpush1.msra.mxu0 0.0
    %1823 = vmatprep.subr.mxu0 0.0
    %1824 = vmatpush1.msra.mxu0 0.0
    %1825 = vmatprep.subr.mxu0 0.0
    %1826 = vmatpush1.msra.mxu0 0.0
    %1827 = vmatprep.subr.mxu0 0.0
    %1828 = vmatpush1.msra.mxu0 0.0
    %1829 = vmatprep.subr.mxu0 0.0
    %1830 = vmatpush1.msra.mxu0 0.0
    %1831 = vmatprep.subr.mxu0 0.0
    %1832 = vmatpush1.msra.mxu0 0.0
    %1833 = vmatprep.subr.mxu0 0.0
    %1834 = vmatpush1.msra.mxu0 0.0
    %1835 = vmatprep.subr.mxu0 0.0
    %1836 = vmatpush1.msra.mxu0 0.0
    %1837 = vmatprep.subr.mxu0 0.0
    %1838 = vmatpush1.msra.mxu0 0.0
    %1839 = vmatprep.subr.mxu0 0.0
    %1840 = vmatpush1.msra.mxu0 0.0
    %1841 = vmatprep.subr.mxu0 0.0
    %1842 = vmatpush1.msra.mxu0 0.0
    %1843 = vmatprep.subr.mxu0 0.0
    %1844 = vmatpush1.msra.mxu0 0.0
    %1845 = vmatprep.mubr.f32.mxu0 0.0
    %1846 = vmatmul.mubr.f32.gmra.mrb[0].mxu0 %v1779
    %v1847 = vpop.f32.mrb[0].mxu0
    %v1848 = vadd.f32 %v1775, %v1847
    %v1849 = vpop.f32.mrb[0].mxu0
    %1850 = vdwg.mxu0
    %1851 = vrot.lane.b32.xlu0 %v1378, 112
    %v1852 = vpop.permute.xlu0 %1851
    %1853 = vrot.lane.b32.xlu0 %v312, 112
    %v1854 = vpop.permute.xlu0 %1853
    %v1855 = vsel %vm397, %v1852, 0
    %v1857 = vsel %vm397, %v1854, 0
    %1859 = vmatprep.subr.mxu0 0.0
    %1860 = vmatpush1.xpose.msra.mxu0 %v1857
    %1861 = vmatprep.subr.mxu0 0.0
    %1862 = vmatpush1.xpose.msra.mxu0 0.0
    %1863 = vmatprep.subr.mxu0 0.0
    %1864 = vmatpush1.xpose.msra.mxu0 0.0
    %1865 = vmatprep.subr.mxu0 0.0
    %1866 = vmatpush1.xpose.msra.mxu0 0.0
    %1867 = vmatprep.subr.mxu0 0.0
    %1868 = vmatpush1.xpose.msra.mxu0 0.0
    %1869 = vmatprep.subr.mxu0 0.0
    %1870 = vmatpush1.xpose.msra.mxu0 0.0
    %1871 = vmatprep.subr.mxu0 0.0
    %1872 = vmatpush1.xpose.msra.mxu0 0.0
    %1873 = vmatprep.subr.mxu0 0.0
    %1874 = vmatpush1.xpose.msra.mxu0 0.0
    %1875 = vmatprep.subr.mxu0 0.0
    %1876 = vmatpush1.xpose.msra.mxu0 0.0
    %1877 = vmatprep.subr.mxu0 0.0
    %1878 = vmatpush1.xpose.msra.mxu0 0.0
    %1879 = vmatprep.subr.mxu0 0.0
    %1880 = vmatpush1.xpose.msra.mxu0 0.0
    %1881 = vmatprep.subr.mxu0 0.0
    %1882 = vmatpush1.xpose.msra.mxu0 0.0
    %1883 = vmatprep.subr.mxu0 0.0
    %1884 = vmatpush1.xpose.msra.mxu0 0.0
    %1885 = vmatprep.subr.mxu0 0.0
    %1886 = vmatpush1.xpose.msra.mxu0 0.0
    %1887 = vmatprep.subr.mxu0 0.0
    %1888 = vmatpush1.xpose.msra.mxu0 0.0
    %1889 = vmatprep.subr.mxu0 0.0
    %1890 = vmatpush1.xpose.msra.mxu0 0.0
    %1891 = vmatprep.subr.mxu0 0.0
    %1892 = vmatpush1.xpose.msra.mxu0 0.0
    %1893 = vmatprep.subr.mxu0 0.0
    %1894 = vmatpush1.xpose.msra.mxu0 0.0
    %1895 = vmatprep.subr.mxu0 0.0
    %1896 = vmatpush1.xpose.msra.mxu0 0.0
    %1897 = vmatprep.subr.mxu0 0.0
    %1898 = vmatpush1.xpose.msra.mxu0 0.0
    %1899 = vmatprep.subr.mxu0 0.0
    %1900 = vmatpush1.xpose.msra.mxu0 0.0
    %1901 = vmatprep.subr.mxu0 0.0
    %1902 = vmatpush1.xpose.msra.mxu0 0.0
    %1903 = vmatprep.subr.mxu0 0.0
    %1904 = vmatpush1.xpose.msra.mxu0 0.0
    %1905 = vmatprep.subr.mxu0 0.0
    %1906 = vmatpush1.xpose.msra.mxu0 0.0
    %1907 = vmatprep.subr.mxu0 0.0
    %1908 = vmatpush1.xpose.msra.mxu0 0.0
    %1909 = vmatprep.subr.mxu0 0.0
    %1910 = vmatpush1.xpose.msra.mxu0 0.0
    %1911 = vmatprep.subr.mxu0 0.0
    %1912 = vmatpush1.xpose.msra.mxu0 0.0
    %1913 = vmatprep.subr.mxu0 0.0
    %1914 = vmatpush1.xpose.msra.mxu0 0.0
    %1915 = vmatprep.subr.mxu0 0.0
    %1916 = vmatpush1.xpose.msra.mxu0 0.0
    %1917 = vmatprep.subr.mxu0 0.0
    %1918 = vmatpush1.xpose.msra.mxu0 0.0
    %1919 = vmatprep.subr.mxu0 0.0
    %1920 = vmatpush1.xpose.msra.mxu0 0.0
    %1921 = vmatprep.subr.mxu0 0.0
    %1922 = vmatpush1.xpose.msra.mxu0 0.0
    %1923 = vmatprep.mubr.f32.mxu0 0.0
    %1924 = vmatmul.mubr.f32.gmra.mrb[0].mxu0 %v1855
    %v1925 = vpop.f32.mrb[0].mxu0
    %v1926 = vadd.f32 0.0, %v1925
    %v1927 = vpop.f32.mrb[0].mxu0
    %1928 = vdwg.mxu0
    %v1929 = vsel %vm397, %v1926, -inf
    %1930 = vmax.xlane.f32.xlu0 %v1929
    %v1931 = vpop.xlane.xlu0 %1930
    %v1932 = vsub.f32 %v1926, %v1931
    %v1933 = vmul.f32 %v1932, 1.442695
    %v1934 = vpow.pop %v1933
    %v1935 = vsel %vm397, %v1934, 0.0
    %1936 = vadd.xlane.f32.xlu0 %v1935
    %v1937 = vpop.xlane.xlu0 %1936
    %v1938 = vrcp.pop %v1937
    %v1939 = vmul.f32 %v1934, %v1938
    %1940 = vrot.lane.b32.xlu0 %v393, 112
    %v1941 = vpop.permute.xlu0 %1940
    %v1944 = vsel %vm397, %v1939, 0
    %1946 = vmatprep.subr.mxu0 0.0
    %1947 = vmatpush1.msra.mxu0 %v1941
    %1948 = vmatprep.subr.mxu0 0.0
    %1949 = vmatpush1.msra.mxu0 0.0
    %1950 = vmatprep.subr.mxu0 0.0
    %1951 = vmatpush1.msra.mxu0 0.0
    %1952 = vmatprep.subr.mxu0 0.0
    %1953 = vmatpush1.msra.mxu0 0.0
    %1954 = vmatprep.subr.mxu0 0.0
    %1955 = vmatpush1.msra.mxu0 0.0
    %1956 = vmatprep.subr.mxu0 0.0
    %1957 = vmatpush1.msra.mxu0 0.0
    %1958 = vmatprep.subr.mxu0 0.0
    %1959 = vmatpush1.msra.mxu0 0.0
    %1960 = vmatprep.subr.mxu0 0.0
    %1961 = vmatpush1.msra.mxu0 0.0
    %1962 = vmatprep.subr.mxu0 0.0
    %1963 = vmatpush1.msra.mxu0 0.0
    %1964 = vmatprep.subr.mxu0 0.0
    %1965 = vmatpush1.msra.mxu0 0.0
    %1966 = vmatprep.subr.mxu0 0.0
    %1967 = vmatpush1.msra.mxu0 0.0
    %1968 = vmatprep.subr.mxu0 0.0
    %1969 = vmatpush1.msra.mxu0 0.0
    %1970 = vmatprep.subr.mxu0 0.0
    %1971 = vmatpush1.msra.mxu0 0.0
    %1972 = vmatprep.subr.mxu0 0.0
    %1973 = vmatpush1.msra.mxu0 0.0
    %1974 = vmatprep.subr.mxu0 0.0
    %1975 = vmatpush1.msra.mxu0 0.0
    %1976 = vmatprep.subr.mxu0 0.0
    %1977 = vmatpush1.msra.mxu0 0.0
    %1978 = vmatprep.subr.mxu0 0.0
    %1979 = vmatpush1.msra.mxu0 0.0
    %1980 = vmatprep.subr.mxu0 0.0
    %1981 = vmatpush1.msra.mxu0 0.0
    %1982 = vmatprep.subr.mxu0 0.0
    %1983 = vmatpush1.msra.mxu0 0.0
    %1984 = vmatprep.subr.mxu0 0.0
    %1985 = vmatpush1.msra.mxu0 0.0
    %1986 = vmatprep.subr.mxu0 0.0
    %1987 = vmatpush1.msra.mxu0 0.0
    %1988 = vmatprep.subr.mxu0 0.0
    %1989 = vmatpush1.msra.mxu0 0.0
    %1990 = vmatprep.subr.mxu0 0.0
    %1991 = vmatpush1.msra.mxu0 0.0
    %1992 = vmatprep.subr.mxu0 0.0
    %1993 = vmatpush1.msra.mxu0 0.0
    %1994 = vmatprep.subr.mxu0 0.0
    %1995 = vmatpush1.msra.mxu0 0.0
    %1996 = vmatprep.subr.mxu0 0.0
    %1997 = vmatpush1.msra.mxu0 0.0
    %1998 = vmatprep.subr.mxu0 0.0
    %1999 = vmatpush1.msra.mxu0 0.0
    %2000 = vmatprep.subr.mxu0 0.0
    %2001 = vmatpush1.msra.mxu0 0.0
    %2002 = vmatprep.subr.mxu0 0.0
    %2003 = vmatpush1.msra.mxu0 0.0
    %2004 = vmatprep.subr.mxu0 0.0
    %2005 = vmatpush1.msra.mxu0 0.0
    %2006 = vmatprep.subr.mxu0 0.0
    %2007 = vmatpush1.msra.mxu0 0.0
    %2008 = vmatprep.subr.mxu0 0.0
    %2009 = vmatpush1.msra.mxu0 0.0
    %2010 = vmatprep.mubr.f32.mxu0 0.0
    %2011 = vmatmul.mubr.f32.gmra.mrb[0].mxu0 %v1944
    %v2012 = vpop.f32.mrb[0].mxu0
    %v2013 = vadd.f32 0.0, %v2012
    %v2014 = vpop.f32.mrb[0].mxu0
    %2015 = vdwg.mxu0
    %v2017 = vsel %vm397, %v2013, 0
    %2019 = vmatprep.subr.mxu0 0.0
    %2020 = vmatpush1.msra.mxu0 %v148
    %2021 = vmatprep.subr.mxu0 0.0
    %2022 = vmatpush1.msra.mxu0 0.0
    %2023 = vmatprep.subr.mxu0 0.0
    %2024 = vmatpush1.msra.mxu0 0.0
    %2025 = vmatprep.subr.mxu0 0.0
    %2026 = vmatpush1.msra.mxu0 0.0
    %2027 = vmatprep.subr.mxu0 0.0
    %2028 = vmatpush1.msra.mxu0 0.0
    %2029 = vmatprep.subr.mxu0 0.0
    %2030 = vmatpush1.msra.mxu0 0.0
    %2031 = vmatprep.subr.mxu0 0.0
    %2032 = vmatpush1.msra.mxu0 0.0
    %2033 = vmatprep.subr.mxu0 0.0
    %2034 = vmatpush1.msra.mxu0 0.0
    %2035 = vmatprep.subr.mxu0 0.0
    %2036 = vmatpush1.msra.mxu0 0.0
    %2037 = vmatprep.subr.mxu0 0.0
    %2038 = vmatpush1.msra.mxu0 0.0
    %2039 = vmatprep.subr.mxu0 0.0
    %2040 = vmatpush1.msra.mxu0 0.0
    %2041 = vmatprep.subr.mxu0 0.0
    %2042 = vmatpush1.msra.mxu0 0.0
    %2043 = vmatprep.subr.mxu0 0.0
    %2044 = vmatpush1.msra.mxu0 0.0
    %2045 = vmatprep.subr.mxu0 0.0
    %2046 = vmatpush1.msra.mxu0 0.0
    %2047 = vmatprep.subr.mxu0 0.0
    %2048 = vmatpush1.msra.mxu0 0.0
    %2049 = vmatprep.subr.mxu0 0.0
    %2050 = vmatpush1.msra.mxu0 0.0
    %2051 = vmatprep.subr.mxu0 0.0
    %2052 = vmatpush1.msra.mxu0 0.0
    %2053 = vmatprep.subr.mxu0 0.0
    %2054 = vmatpush1.msra.mxu0 0.0
    %2055 = vmatprep.subr.mxu0 0.0
    %2056 = vmatpush1.msra.mxu0 0.0
    %2057 = vmatprep.subr.mxu0 0.0
    %2058 = vmatpush1.msra.mxu0 0.0
    %2059 = vmatprep.subr.mxu0 0.0
    %2060 = vmatpush1.msra.mxu0 0.0
    %2061 = vmatprep.subr.mxu0 0.0
    %2062 = vmatpush1.msra.mxu0 0.0
    %2063 = vmatprep.subr.mxu0 0.0
    %2064 = vmatpush1.msra.mxu0 0.0
    %2065 = vmatprep.subr.mxu0 0.0
    %2066 = vmatpush1.msra.mxu0 0.0
    %2067 = vmatprep.subr.mxu0 0.0
    %2068 = vmatpush1.msra.mxu0 0.0
    %2069 = vmatprep.subr.mxu0 0.0
    %2070 = vmatpush1.msra.mxu0 0.0
    %2071 = vmatprep.subr.mxu0 0.0
    %2072 = vmatpush1.msra.mxu0 0.0
    %2073 = vmatprep.subr.mxu0 0.0
    %2074 = vmatpush1.msra.mxu0 0.0
    %2075 = vmatprep.subr.mxu0 0.0
    %2076 = vmatpush1.msra.mxu0 0.0
    %2077 = vmatprep.subr.mxu0 0.0
    %2078 = vmatpush1.msra.mxu0 0.0
    %2079 = vmatprep.subr.mxu0 0.0
    %2080 = vmatpush1.msra.mxu0 0.0
    %2081 = vmatprep.subr.mxu0 0.0
    %2082 = vmatpush1.msra.mxu0 0.0
    %2083 = vmatprep.mubr.f32.mxu0 0.0
    %2084 = vmatmul.mubr.f32.gmra.mrb[0].mxu0 %v2017
    %v2085 = vpop.f32.mrb[0].mxu0
    %v2086 = vadd.f32 0.0, %v2085
    %v2087 = vpop.f32.mrb[0].mxu0
    %2088 = vdwg.mxu0
    %v2089 = vadd.f32 %v1848, %v2086
    %2090 = vrot.lane.b32.xlu0 %v1378, 104
    %v2091 = vpop.permute.xlu0 %2090
    %2092 = vrot.lane.b32.xlu0 %v312, 104
    %v2093 = vpop.permute.xlu0 %2092
    %v2094 = vsel %vm397, %v2091, 0
    %v2096 = vsel %vm397, %v2093, 0
    %2098 = vmatprep.subr.mxu0 0.0
    %2099 = vmatpush1.xpose.msra.mxu0 %v2096
    %2100 = vmatprep.subr.mxu0 0.0
    %2101 = vmatpush1.xpose.msra.mxu0 0.0
    %2102 = vmatprep.subr.mxu0 0.0
    %2103 = vmatpush1.xpose.msra.mxu0 0.0
    %2104 = vmatprep.subr.mxu0 0.0
    %2105 = vmatpush1.xpose.msra.mxu0 0.0
    %2106 = vmatprep.subr.mxu0 0.0
    %2107 = vmatpush1.xpose.msra.mxu0 0.0
    %2108 = vmatprep.subr.mxu0 0.0
    %2109 = vmatpush1.xpose.msra.mxu0 0.0
    %2110 = vmatprep.subr.mxu0 0.0
    %2111 = vmatpush1.xpose.msra.mxu0 0.0
    %2112 = vmatprep.subr.mxu0 0.0
    %2113 = vmatpush1.xpose.msra.mxu0 0.0
    %2114 = vmatprep.subr.mxu0 0.0
    %2115 = vmatpush1.xpose.msra.mxu0 0.0
    %2116 = vmatprep.subr.mxu0 0.0
    %2117 = vmatpush1.xpose.msra.mxu0 0.0
    %2118 = vmatprep.subr.mxu0 0.0
    %2119 = vmatpush1.xpose.msra.mxu0 0.0
    %2120 = vmatprep.subr.mxu0 0.0
    %2121 = vmatpush1.xpose.msra.mxu0 0.0
    %2122 = vmatprep.subr.mxu0 0.0
    %2123 = vmatpush1.xpose.msra.mxu0 0.0
    %2124 = vmatprep.subr.mxu0 0.0
    %2125 = vmatpush1.xpose.msra.mxu0 0.0
    %2126 = vmatprep.subr.mxu0 0.0
    %2127 = vmatpush1.xpose.msra.mxu0 0.0
    %2128 = vmatprep.subr.mxu0 0.0
    %2129 = vmatpush1.xpose.msra.mxu0 0.0
    %2130 = vmatprep.subr.mxu0 0.0
    %2131 = vmatpush1.xpose.msra.mxu0 0.0
    %2132 = vmatprep.subr.mxu0 0.0
    %2133 = vmatpush1.xpose.msra.mxu0 0.0
    %2134 = vmatprep.subr.mxu0 0.0
    %2135 = vmatpush1.xpose.msra.mxu0 0.0
    %2136 = vmatprep.subr.mxu0 0.0
    %2137 = vmatpush1.xpose.msra.mxu0 0.0
    %2138 = vmatprep.subr.mxu0 0.0
    %2139 = vmatpush1.xpose.msra.mxu0 0.0
    %2140 = vmatprep.subr.mxu0 0.0
    %2141 = vmatpush1.xpose.msra.mxu0 0.0
    %2142 = vmatprep.subr.mxu0 0.0
    %2143 = vmatpush1.xpose.msra.mxu0 0.0
    %2144 = vmatprep.subr.mxu0 0.0
    %2145 = vmatpush1.xpose.msra.mxu0 0.0
    %2146 = vmatprep.subr.mxu0 0.0
    %2147 = vmatpush1.xpose.msra.mxu0 0.0
    %2148 = vmatprep.subr.mxu0 0.0
    %2149 = vmatpush1.xpose.msra.mxu0 0.0
    %2150 = vmatprep.subr.mxu0 0.0
    %2151 = vmatpush1.xpose.msra.mxu0 0.0
    %2152 = vmatprep.subr.mxu0 0.0
    %2153 = vmatpush1.xpose.msra.mxu0 0.0
    %2154 = vmatprep.subr.mxu0 0.0
    %2155 = vmatpush1.xpose.msra.mxu0 0.0
    %2156 = vmatprep.subr.mxu0 0.0
    %2157 = vmatpush1.xpose.msra.mxu0 0.0
    %2158 = vmatprep.subr.mxu0 0.0
    %2159 = vmatpush1.xpose.msra.mxu0 0.0
    %2160 = vmatprep.subr.mxu0 0.0
    %2161 = vmatpush1.xpose.msra.mxu0 0.0
    %2162 = vmatprep.mubr.f32.mxu0 0.0
    %2163 = vmatmul.mubr.f32.gmra.mrb[0].mxu0 %v2094
    %v2164 = vpop.f32.mrb[0].mxu0
    %v2165 = vadd.f32 0.0, %v2164
    %v2166 = vpop.f32.mrb[0].mxu0
    %2167 = vdwg.mxu0
    %v2168 = vsel %vm397, %v2165, -inf
    %2169 = vmax.xlane.f32.xlu0 %v2168
    %v2170 = vpop.xlane.xlu0 %2169
    %v2171 = vsub.f32 %v2165, %v2170
    %v2172 = vmul.f32 %v2171, 1.442695
    %v2173 = vpow.pop %v2172
    %v2174 = vsel %vm397, %v2173, 0.0
    %2175 = vadd.xlane.f32.xlu0 %v2174
    %v2176 = vpop.xlane.xlu0 %2175
    %v2177 = vrcp.pop %v2176
    %v2178 = vmul.f32 %v2173, %v2177
    %2179 = vrot.lane.b32.xlu0 %v393, 104
    %v2180 = vpop.permute.xlu0 %2179
    %v2183 = vsel %vm397, %v2178, 0
    %2185 = vmatprep.subr.mxu0 0.0
    %2186 = vmatpush1.msra.mxu0 %v2180
    %2187 = vmatprep.subr.mxu0 0.0
    %2188 = vmatpush1.msra.mxu0 0.0
    %2189 = vmatprep.subr.mxu0 0.0
    %2190 = vmatpush1.msra.mxu0 0.0
    %2191 = vmatprep.subr.mxu0 0.0
    %2192 = vmatpush1.msra.mxu0 0.0
    %2193 = vmatprep.subr.mxu0 0.0
    %2194 = vmatpush1.msra.mxu0 0.0
    %2195 = vmatprep.subr.mxu0 0.0
    %2196 = vmatpush1.msra.mxu0 0.0
    %2197 = vmatprep.subr.mxu0 0.0
    %2198 = vmatpush1.msra.mxu0 0.0
    %2199 = vmatprep.subr.mxu0 0.0
    %2200 = vmatpush1.msra.mxu0 0.0
    %2201 = vmatprep.subr.mxu0 0.0
    %2202 = vmatpush1.msra.mxu0 0.0
    %2203 = vmatprep.subr.mxu0 0.0
    %2204 = vmatpush1.msra.mxu0 0.0
    %2205 = vmatprep.subr.mxu0 0.0
    %2206 = vmatpush1.msra.mxu0 0.0
    %2207 = vmatprep.subr.mxu0 0.0
    %2208 = vmatpush1.msra.mxu0 0.0
    %2209 = vmatprep.subr.mxu0 0.0
    %2210 = vmatpush1.msra.mxu0 0.0
    %2211 = vmatprep.subr.mxu0 0.0
    %2212 = vmatpush1.msra.mxu0 0.0
    %2213 = vmatprep.subr.mxu0 0.0
    %2214 = vmatpush1.msra.mxu0 0.0
    %2215 = vmatprep.subr.mxu0 0.0
    %2216 = vmatpush1.msra.mxu0 0.0
    %2217 = vmatprep.subr.mxu0 0.0
    %2218 = vmatpush1.msra.mxu0 0.0
    %2219 = vmatprep.subr.mxu0 0.0
    %2220 = vmatpush1.msra.mxu0 0.0
    %2221 = vmatprep.subr.mxu0 0.0
    %2222 = vmatpush1.msra.mxu0 0.0
    %2223 = vmatprep.subr.mxu0 0.0
    %2224 = vmatpush1.msra.mxu0 0.0
    %2225 = vmatprep.subr.mxu0 0.0
    %2226 = vmatpush1.msra.mxu0 0.0
    %2227 = vmatprep.subr.mxu0 0.0
    %2228 = vmatpush1.msra.mxu0 0.0
    %2229 = vmatprep.subr.mxu0 0.0
    %2230 = vmatpush1.msra.mxu0 0.0
    %2231 = vmatprep.subr.mxu0 0.0
    %2232 = vmatpush1.msra.mxu0 0.0
    %2233 = vmatprep.subr.mxu0 0.0
    %2234 = vmatpush1.msra.mxu0 0.0
    %2235 = vmatprep.subr.mxu0 0.0
    %2236 = vmatpush1.msra.mxu0 0.0
    %2237 = vmatprep.subr.mxu0 0.0
    %2238 = vmatpush1.msra.mxu0 0.0
    %2239 = vmatprep.subr.mxu0 0.0
    %2240 = vmatpush1.msra.mxu0 0.0
    %2241 = vmatprep.subr.mxu0 0.0
    %2242 = vmatpush1.msra.mxu0 0.0
    %2243 = vmatprep.subr.mxu0 0.0
    %2244 = vmatpush1.msra.mxu0 0.0
    %2245 = vmatprep.subr.mxu0 0.0
    %2246 = vmatpush1.msra.mxu0 0.0
    %2247 = vmatprep.subr.mxu0 0.0
    %2248 = vmatpush1.msra.mxu0 0.0
    %2249 = vmatprep.mubr.f32.mxu0 0.0
    %2250 = vmatmul.mubr.f32.gmra.mrb[0].mxu0 %v2183
    %v2251 = vpop.f32.mrb[0].mxu0
    %v2252 = vadd.f32 0.0, %v2251
    %v2253 = vpop.f32.mrb[0].mxu0
    %2254 = vdwg.mxu0
    %v2256 = vsel %vm397, %v2252, 0
    %2258 = vmatprep.subr.mxu0 0.0
    %2259 = vmatpush1.msra.mxu0 %v149
    %2260 = vmatprep.subr.mxu0 0.0
    %2261 = vmatpush1.msra.mxu0 0.0
    %2262 = vmatprep.subr.mxu0 0.0
    %2263 = vmatpush1.msra.mxu0 0.0
    %2264 = vmatprep.subr.mxu0 0.0
    %2265 = vmatpush1.msra.mxu0 0.0
    %2266 = vmatprep.subr.mxu0 0.0
    %2267 = vmatpush1.msra.mxu0 0.0
    %2268 = vmatprep.subr.mxu0 0.0
    %2269 = vmatpush1.msra.mxu0 0.0
    %2270 = vmatprep.subr.mxu0 0.0
    %2271 = vmatpush1.msra.mxu0 0.0
    %2272 = vmatprep.subr.mxu0 0.0
    %2273 = vmatpush1.msra.mxu0 0.0
    %2274 = vmatprep.subr.mxu0 0.0
    %2275 = vmatpush1.msra.mxu0 0.0
    %2276 = vmatprep.subr.mxu0 0.0
    %2277 = vmatpush1.msra.mxu0 0.0
    %2278 = vmatprep.subr.mxu0 0.0
    %2279 = vmatpush1.msra.mxu0 0.0
    %2280 = vmatprep.subr.mxu0 0.0
    %2281 = vmatpush1.msra.mxu0 0.0
    %2282 = vmatprep.subr.mxu0 0.0
    %2283 = vmatpush1.msra.mxu0 0.0
    %2284 = vmatprep.subr.mxu0 0.0
    %2285 = vmatpush1.msra.mxu0 0.0
    %2286 = vmatprep.subr.mxu0 0.0
    %2287 = vmatpush1.msra.mxu0 0.0
    %2288 = vmatprep.subr.mxu0 0.0
    %2289 = vmatpush1.msra.mxu0 0.0
    %2290 = vmatprep.subr.mxu0 0.0
    %2291 = vmatpush1.msra.mxu0 0.0
    %2292 = vmatprep.subr.mxu0 0.0
    %2293 = vmatpush1.msra.mxu0 0.0
    %2294 = vmatprep.subr.mxu0 0.0
    %2295 = vmatpush1.msra.mxu0 0.0
    %2296 = vmatprep.subr.mxu0 0.0
    %2297 = vmatpush1.msra.mxu0 0.0
    %2298 = vmatprep.subr.mxu0 0.0
    %2299 = vmatpush1.msra.mxu0 0.0
    %2300 = vmatprep.subr.mxu0 0.0
    %2301 = vmatpush1.msra.mxu0 0.0
    %2302 = vmatprep.subr.mxu0 0.0
    %2303 = vmatpush1.msra.mxu0 0.0
    %2304 = vmatprep.subr.mxu0 0.0
    %2305 = vmatpush1.msra.mxu0 0.0
    %2306 = vmatprep.subr.mxu0 0.0
    %2307 = vmatpush1.msra.mxu0 0.0
    %2308 = vmatprep.subr.mxu0 0.0
    %2309 = vmatpush1.msra.mxu0 0.0
    %2310 = vmatprep.subr.mxu0 0.0
    %2311 = vmatpush1.msra.mxu0 0.0
    %2312 = vmatprep.subr.mxu0 0.0
    %2313 = vmatpush1.msra.mxu0 0.0
    %2314 = vmatprep.subr.mxu0 0.0
    %2315 = vmatpush1.msra.mxu0 0.0
    %2316 = vmatprep.subr.mxu0 0.0
    %2317 = vmatpush1.msra.mxu0 0.0
    %2318 = vmatprep.subr.mxu0 0.0
    %2319 = vmatpush1.msra.mxu0 0.0
    %2320 = vmatprep.subr.mxu0 0.0
    %2321 = vmatpush1.msra.mxu0 0.0
    %2322 = vmatprep.mubr.f32.mxu0 0.0
    %2323 = vmatmul.mubr.f32.gmra.mrb[0].mxu0 %v2256
    %v2324 = vpop.f32.mrb[0].mxu0
    %v2325 = vadd.f32 0.0, %v2324
    %v2326 = vpop.f32.mrb[0].mxu0
    %2327 = vdwg.mxu0
    %v2328 = vadd.f32 %v2089, %v2325
    %v2329 = vadd.f32 %v2328, %v129
    %v2330 = vsel %vm152, %v2329, 0.0
    %2331 = vadd.xlane.f32.xlu0 %v2330
    %v2332 = vpop.xlane.xlu0 %2331
    %v2333 = vmul.f32 %v2332, %v1352
    %v2334 = vsub.f32 %v2329, %v2333
    %v2335 = vmul.f32 %v2334, %v2334
    %v2336 = vsel %vm152, %v2335, 0.0
    %2337 = vadd.xlane.f32.xlu0 %v2336
    %v2338 = vpop.xlane.xlu0 %2337
    %v2339 = vmul.f32 %v2338, %v1352
    %v2340 = vadd.f32 %v2339, 1e-06
    %v2341 = vrsqrt.pop %v2340
    %v2342 = vmul.f32 %v2334, %v2341
    %v2343 = vmul.f32 %v2342, %v1367
    %v2344 = vadd.f32 %v2343, %v1374
    %2345 = vst.msk [vmem:[#allocation14 + $0x8] sm:$0xff] %vm152, %v2344
    // Predicated region
    $region66: #{tpu_custom_call.1} parent=1 // pred_check
      _
    $region67: #{tpu_custom_call.1} parent=1 // pred_check_branch
      %2347 = sbr.rel (0) target = $region69
    $region68: #{tpu_custom_call.1} parent=1 // pred_region
      %s2349 = ssub.s32 256, 256
      %2350 = vsyncadd [#allocation4], %s2349
      %s2351 = sshll.u32 [#allocation14], 4
      %s2352 = int_to_ptr.vmem [resolvable:$true] %s2351
      %2357 = dma.vmem_to_hbm [thread:$0]  %s2352, 256, %s9, [#allocation4], 128, 128, 8
    $region69: #{tpu_custom_call.1} parent=1 // pred_fallthru
      _
    // Predicated region
    $region70: #{tpu_custom_call.1} parent=1 // pred_check
      _
    $region71: #{tpu_custom_call.1} parent=1 // pred_check_branch
      %2359 = sbr.rel (0) target = $region73
    $region72: #{tpu_custom_call.1} parent=1 // pred_region
      %2360 = dma.done [#allocation4], 256
    $region73: #{tpu_custom_call.1} parent=1 // pred_fallthru
      _
    %2361 = vsyncpa [#allocation3], 1
    %2362 = vsyncpa [#allocation6], 1
    %2363 = vsyncpa [#allocation9], 1
    %2364 = vsyncpa [#allocation12], 1
    %2365 = vsyncpa [#allocation4], 1

</llo_original>
